<compile_context>
chip_gen: v5e
topology: v5e:2x2
jax: 0.10.0
libtpu: 0.0.40
codegen_flags: <defaults>
</compile_context>

<pallas_src>
import functools

import jax
import jax.numpy as jnp
from jax.experimental import pallas as pl
from jax.experimental.pallas import tpu as pltpu


def _round_up(n, m):
    return ((n + m - 1) // m) * m


def _vmem_budget_bytes():
    """Per-generation scoped-VMEM limit (~75% of reported capacity)."""
    cap = None
    try:
        info = pltpu.get_tpu_info()
        for attr in ("vmem_capacity_bytes", "vmem_size_bytes", "vmem_bytes"):
            v = getattr(info, attr, None)
            if v is not None:
                v = int(v)
                if v > 0:
                    cap = v
                    break
    except Exception:
        cap = None
    if cap is None:
        cap = 64 * 1024 * 1024  # conservative fallback (v7x per-TC physical)
    return int(cap * 3 // 4)


def _num_tensorcores():
    """Best-effort TensorCore-per-device count; default 1 (safe on v5e/v6e)."""
    try:
        info = pltpu.get_tpu_info()
        for attr in ("num_cores", "core_count", "num_tensorcores"):
            v = getattr(info, attr, None)
            if v is not None:
                v = int(v)
                if v > 0:
                    return v
    except Exception:
        pass
    try:
        v = getattr(jax.devices()[0], "num_cores", None)
        if v is not None:
            v = int(v)
            if v > 0:
                return v
    except Exception:
        pass
    return 1


def _lstm_kernel(gx_ref, wh_ref, h0_ref, c0_ref,      # inputs
                 hseq_ref, cfin_ref,                  # outputs
                 h_sc, c_sc,                          # VMEM scratch (carry)
                 *, T, Hp, last_t, unroll):
    s = pl.program_id(1)                              # sequence-chunk index

    @pl.when(s == 0)
    def _init():
        h_sc[...] = h0_ref[0]
        c_sc[...] = c0_ref[0]

    wh = wh_ref[...]                                  # (Hp, 4Hp) bf16, VMEM-resident
    t_base = s * T                                    # global timestep offset

    def step(t, carry):
        h, c = carry
        # Hot path: one MXU matmul per step (x-projection was hoisted); gx is bf16.
        gates = gx_ref[t].astype(jnp.float32) + jnp.dot(
            h.astype(jnp.bfloat16), wh, preferred_element_type=jnp.float32)
        # One fused sigmoid over the contiguous [forget|in|out] slab (lane-aligned),
        # tanh over the [cell] slab; all f32 elementwise.
        sig = jax.nn.sigmoid(gates[:, :3 * Hp])
        f_t = sig[:, 0 * Hp:1 * Hp]
        i_t = sig[:, 1 * Hp:2 * Hp]
        o_t = sig[:, 2 * Hp:3 * Hp]
        g_t = jnp.tanh(gates[:, 3 * Hp:])
        c_new = f_t * c + i_t * g_t
        h_new = o_t * jnp.tanh(c_new)
        hseq_ref[t] = h_new                           # lane-dense (BB, Hp) store

        # Capture the final cell state at the *real* last timestep (time padding
        # past S never contaminates the returned c).
        @pl.when(t_base + t == last_t)
        def _capture():
            cfin_ref[0] = c_new

        return h_new, c_new

    h, c = jax.lax.fori_loop(0, T, step, (h_sc[...], c_sc[...]), unroll=unroll)
    h_sc[...] = h
    c_sc[...] = c


def lstm_forward(x, wx_p, wh_p, b_p, hidden_size, h0=None, c0=None):
    """x: (S, B, I) f32; wx_p: (I, 4Hp) bf16; wh_p: (Hp, 4Hp) bf16; b_p: (4Hp,) f32.
    Returns h_seq (S,B,H), (h (1,B,H), c (1,B,H)) — same as the PyTorch module."""
    S, B, I = x.shape
    H = hidden_size
    Hp = wh_p.shape[0]

    # Batch padding / core split: split only with >=2 TensorCores and halves >= 64.
    Bp = _round_up(B, 8)
    cores = _num_tensorcores()
    nb = 2 if (cores >= 2 and Bp % 16 == 0 and (Bp // 2) >= 64) else 1
    BB = Bp // nb

    # VMEM-budget-aware sequence chunk T.
    vmem_limit = _vmem_budget_bytes()
    wh_bytes = Hp * 4 * Hp * 2                       # bf16, single-buffered (Buffered(1))
    fixed = (wh_bytes
             + 2 * 2 * BB * Hp * 4                   # h0 + c0 blocks, double-buffered f32
             + 2 * BB * Hp * 4                       # final-c out block, double-buffered
             + 2 * BB * Hp * 4                       # h/c carry scratch
             + 2 * 1024 * 1024)                      # headroom
    per_t = 2 * (BB * 4 * Hp * 2) + 2 * (BB * Hp * 4)  # gx(bf16) + hseq(f32) per timestep
    T = int(max(1, min(64, S, (vmem_limit - fixed) // per_t)))
    Sp = _round_up(S, T)

    # Pad the (small) input BEFORE the hoisted projection; gx comes out padded.
    x_p = jnp.zeros((Sp, Bp, I), jnp.float32).at[:S, :B, :].set(x.astype(jnp.float32))

    # Hoisted input projection: one big bf16 MXU matmul + bias fold, stored as bf16
    # (the dominant HBM stream of the recurrent kernel).
    gx = (jnp.dot(x_p.reshape(Sp * Bp, I).astype(jnp.bfloat16), wx_p,
                  preferred_element_type=jnp.float32) + b_p).astype(jnp.bfloat16)
    gx = gx.reshape(Sp, Bp, 4 * Hp)

    def _prep_state(s0):
        out = jnp.zeros((1, Bp, Hp), jnp.float32)
        if s0 is None:
            return out
        return out.at[:, :B, :H].set(s0.astype(jnp.float32))

    h0p = _prep_state(h0)
    c0p = _prep_state(c0)

    kernel = functools.partial(_lstm_kernel, T=T, Hp=Hp, last_t=S - 1,
                               unroll=int(min(T, 8)))

    hseq_p, cfin_p = pl.pallas_call(
        kernel,
        out_shape=(
            jax.ShapeDtypeStruct((Sp, Bp, Hp), jnp.float32),
            jax.ShapeDtypeStruct((1, Bp, Hp), jnp.float32),
        ),
        grid_spec=pltpu.PrefetchScalarGridSpec(
            num_scalar_prefetch=0,
            grid=(nb, Sp // T),
            in_specs=[
                pl.BlockSpec((T, BB, 4 * Hp), lambda b, s: (s, b, 0)),   # gx chunk (bf16)
                pl.BlockSpec((Hp, 4 * Hp), lambda b, s: (0, 0),
                             pipeline_mode=pl.Buffered(1)),              # Wh, single-buffered
                pl.BlockSpec((1, BB, Hp), lambda b, s: (0, b, 0)),       # h0
                pl.BlockSpec((1, BB, Hp), lambda b, s: (0, b, 0)),       # c0
            ],
            out_specs=(
                pl.BlockSpec((T, BB, Hp), lambda b, s: (s, b, 0)),       # h_seq chunk
                pl.BlockSpec((1, BB, Hp), lambda b, s: (0, b, 0)),       # final c
            ),
            scratch_shapes=[
                pltpu.VMEM((BB, Hp), jnp.float32),                       # h carry
                pltpu.VMEM((BB, Hp), jnp.float32),                       # c carry
            ],
        ),
        compiler_params=pltpu.CompilerParams(
            dimension_semantics=("parallel", "arbitrary"),
            vmem_limit_bytes=int(vmem_limit)),
    )(gx, wh_p, h0p, c0p)

    h_seq = hseq_p[:S, :B, :H]
    h_fin = h_seq[-1:]
    c_fin = cfin_p[:, :B, :H]
    return h_seq, (h_fin, c_fin)


def init_params(key, input_size, hidden_size):
    """Per-gate params mimicking the module's 8 nn.Linear layers.
    Returns list in gate order [forget, in, out, cell] of (W (H,I), bW, U (H,H), bU)."""
    I, H = input_size, hidden_size
    ks = jax.random.split(key, 16)
    bw = 1.0 / jnp.sqrt(jnp.float32(I))
    bu = 1.0 / jnp.sqrt(jnp.float32(H))
    gates = []
    for g in range(4):
        W = jax.random.uniform(ks[4 * g + 0], (H, I), jnp.float32, -bw, bw)
        bW = jax.random.uniform(ks[4 * g + 1], (H,), jnp.float32, -bw, bw)
        U = jax.random.uniform(ks[4 * g + 2], (H, H), jnp.float32, -bu, bu)
        bU = jax.random.uniform(ks[4 * g + 3], (H,), jnp.float32, -bu, bu)
        gates.append((W, bW, U, bU))
    return gates


def prepare_params(gates, input_size, hidden_size):
    """Fuse + lane-pad per-gate weights into kernel layout.
    Gate order [forget, in, out, cell]; each gate padded H -> Hp (mult of 128)."""
    I, H = input_size, hidden_size
    Hp = _round_up(H, 128)
    wx_cols, wh_cols, b_cols = [], [], []
    for (W, bW, U, bU) in gates:
        wx_cols.append(jnp.zeros((I, Hp), jnp.float32).at[:, :H].set(W.T))
        wh_cols.append(jnp.zeros((Hp, Hp), jnp.float32).at[:H, :H].set(U.T))
        b_cols.append(jnp.zeros((Hp,), jnp.float32).at[:H].set(bW + bU))
    wx_p = jnp.concatenate(wx_cols, axis=1).astype(jnp.bfloat16)   # (I, 4Hp)
    wh_p = jnp.concatenate(wh_cols, axis=1).astype(jnp.bfloat16)   # (Hp, 4Hp)
    b_p = jnp.concatenate(b_cols)                                  # (4Hp,)
    return wx_p, wh_p, b_p


def lstm_reference_bf16(x, wx_p, wh_p, b_p, hidden_size):
    """Pure-JAX reference with the same numerics as the kernel (bf16 weights + bf16 gx)."""
    S, B, I = x.shape
    H = hidden_size
    Hp = wh_p.shape[0]
    gx = (jnp.dot(x.reshape(S * B, I).astype(jnp.bfloat16), wx_p,
                  preferred_element_type=jnp.float32) + b_p).astype(jnp.bfloat16)
    gx = gx.reshape(S, B, 4 * Hp)

    def step(carry, g_x):
        h, c = carry
        gates = g_x.astype(jnp.float32) + jnp.dot(
            h.astype(jnp.bfloat16), wh_p, preferred_element_type=jnp.float32)
        f = jax.nn.sigmoid(gates[:, 0 * Hp:1 * Hp])
        i = jax.nn.sigmoid(gates[:, 1 * Hp:2 * Hp])
        o = jax.nn.sigmoid(gates[:, 2 * Hp:3 * Hp])
        g = jnp.tanh(gates[:, 3 * Hp:])
        c = f * c + i * g
        h = o * jnp.tanh(c)
        return (h, c), h

    (h, c), hseq = jax.lax.scan(
        step, (jnp.zeros((B, Hp), jnp.float32), jnp.zeros((B, Hp), jnp.float32)), gx)
    return hseq[:, :, :H], (h[None, :, :H], c[None, :, :H])


def lstm_reference_f32(x, gates, hidden_size):
    """Direct f32 port of the PyTorch module (semantic check; bf16 kernel => loose tol)."""
    S, B, I = x.shape
    H = hidden_size
    (Wf, bWf, Uf, bUf), (Wi, bWi, Ui, bUi), \
        (Wo, bWo, Uo, bUo), (Wc, bWc, Uc, bUc) = gates

    def step(carry, x_t):
        h, c = carry
        f = jax.nn.sigmoid(x_t @ Wf.T + bWf + h @ Uf.T + bUf)
        i = jax.nn.sigmoid(x_t @ Wi.T + bWi + h @ Ui.T + bUi)
        o = jax.nn.sigmoid(x_t @ Wo.T + bWo + h @ Uo.T + bUo)
        g = jnp.tanh(x_t @ Wc.T + bWc + h @ Uc.T + bUc)
        c = f * c + i * g
        h = o * jnp.tanh(c)
        return (h, c), h

    (h, c), hseq = jax.lax.scan(
        step, (jnp.zeros((B, H)), jnp.zeros((B, H))), x)
    return hseq, (h[None], c[None])


if __name__ == "__main__":
    key = jax.random.PRNGKey(0)
    seq_len, batch, input_size, hidden_size = 8, 2, 4, 32

    kx, kp = jax.random.split(key)
    x = jax.random.normal(kx, (seq_len, batch, input_size), jnp.float32)
    gates = init_params(kp, input_size, hidden_size)
    wx_p, wh_p, b_p = prepare_params(gates, input_size, hidden_size)

    h_seq, (h_fin, c_fin) = lstm_forward(x, wx_p, wh_p, b_p, hidden_size)
    jax.block_until_ready((h_seq, h_fin, c_fin))

    # tight check vs numerics-matched (bf16 weights + bf16 gx) reference
    h_seq_r, (h_r, c_r) = lstm_reference_bf16(x, wx_p, wh_p, b_p, hidden_size)
    assert jnp.allclose(h_seq, h_seq_r, atol=2e-3), "h_seq mismatch"
    assert jnp.allclose(h_fin, h_r, atol=2e-3), "final h mismatch"
    assert jnp.allclose(c_fin, c_r, atol=2e-3), "final c mismatch"

    # loose check vs pure-f32 direct port of the PyTorch module
    h_seq_f, (h_f, c_f) = lstm_reference_f32(x, gates, hidden_size)
    assert jnp.allclose(h_seq, h_seq_f, atol=8e-2), "h_seq drifted from f32 semantics"
    assert jnp.allclose(c_fin, c_f, atol=8e-2), "c drifted from f32 semantics"

    print("KERNEL_OK")
</pallas_src>

<mosaic_0001>
module attributes {stable_mosaic.version = 11 : i64} {
  func.func @_lstm_kernel(%arg0: i32, %arg1: i32, %arg2: memref<8x8x512xbf16, #tpu.memory_space<vmem>>, %arg3: memref<128x512xbf16, #tpu.memory_space<vmem>>, %arg4: memref<1x8x128xf32, #tpu.memory_space<vmem>>, %arg5: memref<1x8x128xf32, #tpu.memory_space<vmem>>, %arg6: memref<8x8x128xf32, #tpu.memory_space<vmem>>, %arg7: memref<1x8x128xf32, #tpu.memory_space<vmem>>, %arg8: memref<8x128xf32, #tpu.memory_space<vmem>>, %arg9: memref<8x128xf32, #tpu.memory_space<vmem>>) attributes {dimension_semantics = [#tpu.dimension_semantics<parallel>, #tpu.dimension_semantics<arbitrary>], iteration_bounds = array<i64: 1, 1>, scalar_prefetch = 0 : i64, scratch_operands = 2 : i64, tpu.core_type = #tpu.core_type<tc>, window_params = [{transform_indices = @transform_0, window_bounds = array<i64: 8, 8, 512>}, {pipeline_mode = #tpu.pipeline_mode<synchronous>, transform_indices = @transform_1, window_bounds = array<i64: 128, 512>}, {transform_indices = @transform_2, window_bounds = array<i64: 1, 8, 128>}, {transform_indices = @transform_3, window_bounds = array<i64: 1, 8, 128>}, {transform_indices = @transform_4, window_bounds = array<i64: 8, 8, 128>}, {transform_indices = @transform_5, window_bounds = array<i64: 1, 8, 128>}]} {
    %c0_i32 = arith.constant 0 : i32
    %0 = arith.cmpi eq, %arg1, %c0_i32 : i32
    %1 = arith.extui %0 : i1 to i32
    %c0_i32_0 = arith.constant 0 : i32
    %2 = arith.cmpi ne, %1, %c0_i32_0 : i32
    scf.if %2 {
      %c0_75 = arith.constant 0 : index
      %c0_76 = arith.constant 0 : index
      %c0_77 = arith.constant 0 : index
      %257 = vector.load %arg4[%c0_75, %c0_76, %c0_77] : memref<1x8x128xf32, #tpu.memory_space<vmem>>, vector<1x8x128xf32>
      %258 = vector.shape_cast %257 : vector<1x8x128xf32> to vector<8x128xf32>
      %c0_78 = arith.constant 0 : index
      %c0_79 = arith.constant 0 : index
      %259 = vector.load %arg8[%c0_78, %c0_79] : memref<8x128xf32, #tpu.memory_space<vmem>>, vector<8x128xf32>
      tpu.vector_store %arg8[%c0_78, %c0_79], %258 {strides = array<i32>} : memref<8x128xf32, #tpu.memory_space<vmem>>, vector<8x128xf32>,
      %c0_80 = arith.constant 0 : index
      %c0_81 = arith.constant 0 : index
      %c0_82 = arith.constant 0 : index
      %260 = vector.load %arg5[%c0_80, %c0_81, %c0_82] : memref<1x8x128xf32, #tpu.memory_space<vmem>>, vector<1x8x128xf32>
      %261 = vector.shape_cast %260 : vector<1x8x128xf32> to vector<8x128xf32>
      %c0_83 = arith.constant 0 : index
      %c0_84 = arith.constant 0 : index
      %262 = vector.load %arg9[%c0_83, %c0_84] : memref<8x128xf32, #tpu.memory_space<vmem>>, vector<8x128xf32>
      tpu.vector_store %arg9[%c0_83, %c0_84], %261 {strides = array<i32>} : memref<8x128xf32, #tpu.memory_space<vmem>>, vector<8x128xf32>,
    } else {
    }
    %c0 = arith.constant 0 : index
    %c0_1 = arith.constant 0 : index
    %3 = vector.load %arg3[%c0, %c0_1] : memref<128x512xbf16, #tpu.memory_space<vmem>>, vector<128x512xbf16>
    %c8_i32 = arith.constant 8 : i32
    %4 = arith.muli %arg1, %c8_i32 : i32
    %c0_2 = arith.constant 0 : index
    %c0_3 = arith.constant 0 : index
    %5 = vector.load %arg8[%c0_2, %c0_3] : memref<8x128xf32, #tpu.memory_space<vmem>>, vector<8x128xf32>
    %c0_4 = arith.constant 0 : index
    %c0_5 = arith.constant 0 : index
    %6 = vector.load %arg9[%c0_4, %c0_5] : memref<8x128xf32, #tpu.memory_space<vmem>>, vector<8x128xf32>
    %c0_i32_6 = arith.constant 0 : i32
    %7 = arith.index_cast %c0_i32_6 : i32 to index
    %c0_7 = arith.constant 0 : index
    %c0_8 = arith.constant 0 : index
    %8 = vector.load %arg2[%7, %c0_7, %c0_8] : memref<8x8x512xbf16, #tpu.memory_space<vmem>>, vector<1x8x512xbf16>
    %9 = vector.shape_cast %8 : vector<1x8x512xbf16> to vector<8x512xbf16>
    %10 = arith.extf %9 : vector<8x512xbf16> to vector<8x512xf32>
    %11 = arith.truncf %5 : vector<8x128xf32> to vector<8x128xbf16>
    %cst = arith.constant dense<0.000000e+00> : vector<8x512xf32>
    %12 = tpu.matmul %11, %3, %cst {dimension_numbers = #tpu.dot_dimension_numbers<[1], [0], [0], [1], [0, 0, 1, 1], [], []>} : vector<8x128xbf16>, vector<128x512xbf16>, vector<8x512xf32> -> vector<8x512xf32>
    %13 = arith.addf %10, %12 : vector<8x512xf32>
    %14 = vector.extract_strided_slice %13 {offsets = [0, 0], sizes = [8, 384], strides = [1, 1]} : vector<8x512xf32> to vector<8x384xf32>
    %15 = arith.negf %14 : vector<8x384xf32>
    %16 = math.exp %15 : vector<8x384xf32>
    %cst_9 = arith.constant 1.000000e+00 : f32
    %17 = vector.broadcast %cst_9 : f32 to vector<8x384xf32>
    %18 = arith.addf %17, %16 : vector<8x384xf32>
    %19 = arith.divf %17, %18 : vector<8x384xf32>
    %20 = vector.extract_strided_slice %19 {offsets = [0, 0], sizes = [8, 128], strides = [1, 1]} : vector<8x384xf32> to vector<8x128xf32>
    %21 = vector.extract_strided_slice %19 {offsets = [0, 128], sizes = [8, 128], strides = [1, 1]} : vector<8x384xf32> to vector<8x128xf32>
    %22 = vector.extract_strided_slice %19 {offsets = [0, 256], sizes = [8, 128], strides = [1, 1]} : vector<8x384xf32> to vector<8x128xf32>
    %23 = vector.extract_strided_slice %13 {offsets = [0, 384], sizes = [8, 128], strides = [1, 1]} : vector<8x512xf32> to vector<8x128xf32>
    %24 = math.tanh %23 : vector<8x128xf32>
    %25 = arith.mulf %20, %6 : vector<8x128xf32>
    %26 = arith.mulf %21, %24 : vector<8x128xf32>
    %27 = arith.addf %25, %26 : vector<8x128xf32>
    %28 = math.tanh %27 : vector<8x128xf32>
    %29 = arith.mulf %22, %28 : vector<8x128xf32>
    %30 = arith.index_cast %c0_i32_6 : i32 to index
    %c0_10 = arith.constant 0 : index
    %c0_11 = arith.constant 0 : index
    %31 = vector.load %arg6[%30, %c0_10, %c0_11] : memref<8x8x128xf32, #tpu.memory_space<vmem>>, vector<1x8x128xf32>
    %32 = vector.shape_cast %31 : vector<1x8x128xf32> to vector<8x128xf32>
    %33 = vector.shape_cast %29 : vector<8x128xf32> to vector<1x8x128xf32>
    tpu.vector_store %arg6[%30, %c0_10, %c0_11], %33 {strides = array<i32>} : memref<8x8x128xf32, #tpu.memory_space<vmem>>, vector<1x8x128xf32>,
    %34 = arith.addi %4, %c0_i32_6 : i32
    %c7_i32 = arith.constant 7 : i32
    %35 = arith.cmpi eq, %34, %c7_i32 : i32
    %36 = arith.extui %35 : i1 to i32
    %c0_i32_12 = arith.constant 0 : i32
    %37 = arith.cmpi ne, %36, %c0_i32_12 : i32
    scf.if %37 {
      %c0_75 = arith.constant 0 : index
      %c0_76 = arith.constant 0 : index
      %c0_77 = arith.constant 0 : index
      %257 = vector.load %arg7[%c0_75, %c0_76, %c0_77] : memref<1x8x128xf32, #tpu.memory_space<vmem>>, vector<1x8x128xf32>
      %258 = vector.shape_cast %257 : vector<1x8x128xf32> to vector<8x128xf32>
      %259 = vector.shape_cast %27 : vector<8x128xf32> to vector<1x8x128xf32>
      tpu.vector_store %arg7[%c0_75, %c0_76, %c0_77], %259 {strides = array<i32>} : memref<1x8x128xf32, #tpu.memory_space<vmem>>, vector<1x8x128xf32>,
    } else {
    }
    %c1_i32 = arith.constant 1 : i32
    %38 = arith.index_cast %c1_i32 : i32 to index
    %c0_13 = arith.constant 0 : index
    %c0_14 = arith.constant 0 : index
    %39 = vector.load %arg2[%38, %c0_13, %c0_14] : memref<8x8x512xbf16, #tpu.memory_space<vmem>>, vector<1x8x512xbf16>
    %40 = vector.shape_cast %39 : vector<1x8x512xbf16> to vector<8x512xbf16>
    %41 = arith.extf %40 : vector<8x512xbf16> to vector<8x512xf32>
    %42 = arith.truncf %29 : vector<8x128xf32> to vector<8x128xbf16>
    %cst_15 = arith.constant dense<0.000000e+00> : vector<8x512xf32>
    %43 = tpu.matmul %42, %3, %cst_15 {dimension_numbers = #tpu.dot_dimension_numbers<[1], [0], [0], [1], [0, 0, 1, 1], [], []>} : vector<8x128xbf16>, vector<128x512xbf16>, vector<8x512xf32> -> vector<8x512xf32>
    %44 = arith.addf %41, %43 : vector<8x512xf32>
    %45 = vector.extract_strided_slice %44 {offsets = [0, 0], sizes = [8, 384], strides = [1, 1]} : vector<8x512xf32> to vector<8x384xf32>
    %46 = arith.negf %45 : vector<8x384xf32>
    %47 = math.exp %46 : vector<8x384xf32>
    %cst_16 = arith.constant 1.000000e+00 : f32
    %48 = vector.broadcast %cst_16 : f32 to vector<8x384xf32>
    %49 = arith.addf %48, %47 : vector<8x384xf32>
    %50 = arith.divf %48, %49 : vector<8x384xf32>
    %51 = vector.extract_strided_slice %50 {offsets = [0, 0], sizes = [8, 128], strides = [1, 1]} : vector<8x384xf32> to vector<8x128xf32>
    %52 = vector.extract_strided_slice %50 {offsets = [0, 128], sizes = [8, 128], strides = [1, 1]} : vector<8x384xf32> to vector<8x128xf32>
    %53 = vector.extract_strided_slice %50 {offsets = [0, 256], sizes = [8, 128], strides = [1, 1]} : vector<8x384xf32> to vector<8x128xf32>
    %54 = vector.extract_strided_slice %44 {offsets = [0, 384], sizes = [8, 128], strides = [1, 1]} : vector<8x512xf32> to vector<8x128xf32>
    %55 = math.tanh %54 : vector<8x128xf32>
    %56 = arith.mulf %51, %27 : vector<8x128xf32>
    %57 = arith.mulf %52, %55 : vector<8x128xf32>
    %58 = arith.addf %56, %57 : vector<8x128xf32>
    %59 = math.tanh %58 : vector<8x128xf32>
    %60 = arith.mulf %53, %59 : vector<8x128xf32>
    %61 = arith.index_cast %c1_i32 : i32 to index
    %c0_17 = arith.constant 0 : index
    %c0_18 = arith.constant 0 : index
    %62 = vector.load %arg6[%61, %c0_17, %c0_18] : memref<8x8x128xf32, #tpu.memory_space<vmem>>, vector<1x8x128xf32>
    %63 = vector.shape_cast %62 : vector<1x8x128xf32> to vector<8x128xf32>
    %64 = vector.shape_cast %60 : vector<8x128xf32> to vector<1x8x128xf32>
    tpu.vector_store %arg6[%61, %c0_17, %c0_18], %64 {strides = array<i32>} : memref<8x8x128xf32, #tpu.memory_space<vmem>>, vector<1x8x128xf32>,
    %65 = arith.addi %4, %c1_i32 : i32
    %c7_i32_19 = arith.constant 7 : i32
    %66 = arith.cmpi eq, %65, %c7_i32_19 : i32
    %67 = arith.extui %66 : i1 to i32
    %c0_i32_20 = arith.constant 0 : i32
    %68 = arith.cmpi ne, %67, %c0_i32_20 : i32
    scf.if %68 {
      %c0_75 = arith.constant 0 : index
      %c0_76 = arith.constant 0 : index
      %c0_77 = arith.constant 0 : index
      %257 = vector.load %arg7[%c0_75, %c0_76, %c0_77] : memref<1x8x128xf32, #tpu.memory_space<vmem>>, vector<1x8x128xf32>
      %258 = vector.shape_cast %257 : vector<1x8x128xf32> to vector<8x128xf32>
      %259 = vector.shape_cast %58 : vector<8x128xf32> to vector<1x8x128xf32>
      tpu.vector_store %arg7[%c0_75, %c0_76, %c0_77], %259 {strides = array<i32>} : memref<1x8x128xf32, #tpu.memory_space<vmem>>, vector<1x8x128xf32>,
    } else {
    }
    %c2_i32 = arith.constant 2 : i32
    %69 = arith.index_cast %c2_i32 : i32 to index
    %c0_21 = arith.constant 0 : index
    %c0_22 = arith.constant 0 : index
    %70 = vector.load %arg2[%69, %c0_21, %c0_22] : memref<8x8x512xbf16, #tpu.memory_space<vmem>>, vector<1x8x512xbf16>
    %71 = vector.shape_cast %70 : vector<1x8x512xbf16> to vector<8x512xbf16>
    %72 = arith.extf %71 : vector<8x512xbf16> to vector<8x512xf32>
    %73 = arith.truncf %60 : vector<8x128xf32> to vector<8x128xbf16>
    %cst_23 = arith.constant dense<0.000000e+00> : vector<8x512xf32>
    %74 = tpu.matmul %73, %3, %cst_23 {dimension_numbers = #tpu.dot_dimension_numbers<[1], [0], [0], [1], [0, 0, 1, 1], [], []>} : vector<8x128xbf16>, vector<128x512xbf16>, vector<8x512xf32> -> vector<8x512xf32>
    %75 = arith.addf %72, %74 : vector<8x512xf32>
    %76 = vector.extract_strided_slice %75 {offsets = [0, 0], sizes = [8, 384], strides = [1, 1]} : vector<8x512xf32> to vector<8x384xf32>
    %77 = arith.negf %76 : vector<8x384xf32>
    %78 = math.exp %77 : vector<8x384xf32>
    %cst_24 = arith.constant 1.000000e+00 : f32
    %79 = vector.broadcast %cst_24 : f32 to vector<8x384xf32>
    %80 = arith.addf %79, %78 : vector<8x384xf32>
    %81 = arith.divf %79, %80 : vector<8x384xf32>
    %82 = vector.extract_strided_slice %81 {offsets = [0, 0], sizes = [8, 128], strides = [1, 1]} : vector<8x384xf32> to vector<8x128xf32>
    %83 = vector.extract_strided_slice %81 {offsets = [0, 128], sizes = [8, 128], strides = [1, 1]} : vector<8x384xf32> to vector<8x128xf32>
    %84 = vector.extract_strided_slice %81 {offsets = [0, 256], sizes = [8, 128], strides = [1, 1]} : vector<8x384xf32> to vector<8x128xf32>
    %85 = vector.extract_strided_slice %75 {offsets = [0, 384], sizes = [8, 128], strides = [1, 1]} : vector<8x512xf32> to vector<8x128xf32>
    %86 = math.tanh %85 : vector<8x128xf32>
    %87 = arith.mulf %82, %58 : vector<8x128xf32>
    %88 = arith.mulf %83, %86 : vector<8x128xf32>
    %89 = arith.addf %87, %88 : vector<8x128xf32>
    %90 = math.tanh %89 : vector<8x128xf32>
    %91 = arith.mulf %84, %90 : vector<8x128xf32>
    %92 = arith.index_cast %c2_i32 : i32 to index
    %c0_25 = arith.constant 0 : index
    %c0_26 = arith.constant 0 : index
    %93 = vector.load %arg6[%92, %c0_25, %c0_26] : memref<8x8x128xf32, #tpu.memory_space<vmem>>, vector<1x8x128xf32>
    %94 = vector.shape_cast %93 : vector<1x8x128xf32> to vector<8x128xf32>
    %95 = vector.shape_cast %91 : vector<8x128xf32> to vector<1x8x128xf32>
    tpu.vector_store %arg6[%92, %c0_25, %c0_26], %95 {strides = array<i32>} : memref<8x8x128xf32, #tpu.memory_space<vmem>>, vector<1x8x128xf32>,
    %96 = arith.addi %4, %c2_i32 : i32
    %c7_i32_27 = arith.constant 7 : i32
    %97 = arith.cmpi eq, %96, %c7_i32_27 : i32
    %98 = arith.extui %97 : i1 to i32
    %c0_i32_28 = arith.constant 0 : i32
    %99 = arith.cmpi ne, %98, %c0_i32_28 : i32
    scf.if %99 {
      %c0_75 = arith.constant 0 : index
      %c0_76 = arith.constant 0 : index
      %c0_77 = arith.constant 0 : index
      %257 = vector.load %arg7[%c0_75, %c0_76, %c0_77] : memref<1x8x128xf32, #tpu.memory_space<vmem>>, vector<1x8x128xf32>
      %258 = vector.shape_cast %257 : vector<1x8x128xf32> to vector<8x128xf32>
      %259 = vector.shape_cast %89 : vector<8x128xf32> to vector<1x8x128xf32>
      tpu.vector_store %arg7[%c0_75, %c0_76, %c0_77], %259 {strides = array<i32>} : memref<1x8x128xf32, #tpu.memory_space<vmem>>, vector<1x8x128xf32>,
    } else {
    }
    %c3_i32 = arith.constant 3 : i32
    %100 = arith.index_cast %c3_i32 : i32 to index
    %c0_29 = arith.constant 0 : index
    %c0_30 = arith.constant 0 : index
    %101 = vector.load %arg2[%100, %c0_29, %c0_30] : memref<8x8x512xbf16, #tpu.memory_space<vmem>>, vector<1x8x512xbf16>
    %102 = vector.shape_cast %101 : vector<1x8x512xbf16> to vector<8x512xbf16>
    %103 = arith.extf %102 : vector<8x512xbf16> to vector<8x512xf32>
    %104 = arith.truncf %91 : vector<8x128xf32> to vector<8x128xbf16>
    %cst_31 = arith.constant dense<0.000000e+00> : vector<8x512xf32>
    %105 = tpu.matmul %104, %3, %cst_31 {dimension_numbers = #tpu.dot_dimension_numbers<[1], [0], [0], [1], [0, 0, 1, 1], [], []>} : vector<8x128xbf16>, vector<128x512xbf16>, vector<8x512xf32> -> vector<8x512xf32>
    %106 = arith.addf %103, %105 : vector<8x512xf32>
    %107 = vector.extract_strided_slice %106 {offsets = [0, 0], sizes = [8, 384], strides = [1, 1]} : vector<8x512xf32> to vector<8x384xf32>
    %108 = arith.negf %107 : vector<8x384xf32>
    %109 = math.exp %108 : vector<8x384xf32>
    %cst_32 = arith.constant 1.000000e+00 : f32
    %110 = vector.broadcast %cst_32 : f32 to vector<8x384xf32>
    %111 = arith.addf %110, %109 : vector<8x384xf32>
    %112 = arith.divf %110, %111 : vector<8x384xf32>
    %113 = vector.extract_strided_slice %112 {offsets = [0, 0], sizes = [8, 128], strides = [1, 1]} : vector<8x384xf32> to vector<8x128xf32>
    %114 = vector.extract_strided_slice %112 {offsets = [0, 128], sizes = [8, 128], strides = [1, 1]} : vector<8x384xf32> to vector<8x128xf32>
    %115 = vector.extract_strided_slice %112 {offsets = [0, 256], sizes = [8, 128], strides = [1, 1]} : vector<8x384xf32> to vector<8x128xf32>
    %116 = vector.extract_strided_slice %106 {offsets = [0, 384], sizes = [8, 128], strides = [1, 1]} : vector<8x512xf32> to vector<8x128xf32>
    %117 = math.tanh %116 : vector<8x128xf32>
    %118 = arith.mulf %113, %89 : vector<8x128xf32>
    %119 = arith.mulf %114, %117 : vector<8x128xf32>
    %120 = arith.addf %118, %119 : vector<8x128xf32>
    %121 = math.tanh %120 : vector<8x128xf32>
    %122 = arith.mulf %115, %121 : vector<8x128xf32>
    %123 = arith.index_cast %c3_i32 : i32 to index
    %c0_33 = arith.constant 0 : index
    %c0_34 = arith.constant 0 : index
    %124 = vector.load %arg6[%123, %c0_33, %c0_34] : memref<8x8x128xf32, #tpu.memory_space<vmem>>, vector<1x8x128xf32>
    %125 = vector.shape_cast %124 : vector<1x8x128xf32> to vector<8x128xf32>
    %126 = vector.shape_cast %122 : vector<8x128xf32> to vector<1x8x128xf32>
    tpu.vector_store %arg6[%123, %c0_33, %c0_34], %126 {strides = array<i32>} : memref<8x8x128xf32, #tpu.memory_space<vmem>>, vector<1x8x128xf32>,
    %127 = arith.addi %4, %c3_i32 : i32
    %c7_i32_35 = arith.constant 7 : i32
    %128 = arith.cmpi eq, %127, %c7_i32_35 : i32
    %129 = arith.extui %128 : i1 to i32
    %c0_i32_36 = arith.constant 0 : i32
    %130 = arith.cmpi ne, %129, %c0_i32_36 : i32
    scf.if %130 {
      %c0_75 = arith.constant 0 : index
      %c0_76 = arith.constant 0 : index
      %c0_77 = arith.constant 0 : index
      %257 = vector.load %arg7[%c0_75, %c0_76, %c0_77] : memref<1x8x128xf32, #tpu.memory_space<vmem>>, vector<1x8x128xf32>
      %258 = vector.shape_cast %257 : vector<1x8x128xf32> to vector<8x128xf32>
      %259 = vector.shape_cast %120 : vector<8x128xf32> to vector<1x8x128xf32>
      tpu.vector_store %arg7[%c0_75, %c0_76, %c0_77], %259 {strides = array<i32>} : memref<1x8x128xf32, #tpu.memory_space<vmem>>, vector<1x8x128xf32>,
    } else {
    }
    %c4_i32 = arith.constant 4 : i32
    %131 = arith.index_cast %c4_i32 : i32 to index
    %c0_37 = arith.constant 0 : index
    %c0_38 = arith.constant 0 : index
    %132 = vector.load %arg2[%131, %c0_37, %c0_38] : memref<8x8x512xbf16, #tpu.memory_space<vmem>>, vector<1x8x512xbf16>
    %133 = vector.shape_cast %132 : vector<1x8x512xbf16> to vector<8x512xbf16>
    %134 = arith.extf %133 : vector<8x512xbf16> to vector<8x512xf32>
    %135 = arith.truncf %122 : vector<8x128xf32> to vector<8x128xbf16>
    %cst_39 = arith.constant dense<0.000000e+00> : vector<8x512xf32>
    %136 = tpu.matmul %135, %3, %cst_39 {dimension_numbers = #tpu.dot_dimension_numbers<[1], [0], [0], [1], [0, 0, 1, 1], [], []>} : vector<8x128xbf16>, vector<128x512xbf16>, vector<8x512xf32> -> vector<8x512xf32>
    %137 = arith.addf %134, %136 : vector<8x512xf32>
    %138 = vector.extract_strided_slice %137 {offsets = [0, 0], sizes = [8, 384], strides = [1, 1]} : vector<8x512xf32> to vector<8x384xf32>
    %139 = arith.negf %138 : vector<8x384xf32>
    %140 = math.exp %139 : vector<8x384xf32>
    %cst_40 = arith.constant 1.000000e+00 : f32
    %141 = vector.broadcast %cst_40 : f32 to vector<8x384xf32>
    %142 = arith.addf %141, %140 : vector<8x384xf32>
    %143 = arith.divf %141, %142 : vector<8x384xf32>
    %144 = vector.extract_strided_slice %143 {offsets = [0, 0], sizes = [8, 128], strides = [1, 1]} : vector<8x384xf32> to vector<8x128xf32>
    %145 = vector.extract_strided_slice %143 {offsets = [0, 128], sizes = [8, 128], strides = [1, 1]} : vector<8x384xf32> to vector<8x128xf32>
    %146 = vector.extract_strided_slice %143 {offsets = [0, 256], sizes = [8, 128], strides = [1, 1]} : vector<8x384xf32> to vector<8x128xf32>
    %147 = vector.extract_strided_slice %137 {offsets = [0, 384], sizes = [8, 128], strides = [1, 1]} : vector<8x512xf32> to vector<8x128xf32>
    %148 = math.tanh %147 : vector<8x128xf32>
    %149 = arith.mulf %144, %120 : vector<8x128xf32>
    %150 = arith.mulf %145, %148 : vector<8x128xf32>
    %151 = arith.addf %149, %150 : vector<8x128xf32>
    %152 = math.tanh %151 : vector<8x128xf32>
    %153 = arith.mulf %146, %152 : vector<8x128xf32>
    %154 = arith.index_cast %c4_i32 : i32 to index
    %c0_41 = arith.constant 0 : index
    %c0_42 = arith.constant 0 : index
    %155 = vector.load %arg6[%154, %c0_41, %c0_42] : memref<8x8x128xf32, #tpu.memory_space<vmem>>, vector<1x8x128xf32>
    %156 = vector.shape_cast %155 : vector<1x8x128xf32> to vector<8x128xf32>
    %157 = vector.shape_cast %153 : vector<8x128xf32> to vector<1x8x128xf32>
    tpu.vector_store %arg6[%154, %c0_41, %c0_42], %157 {strides = array<i32>} : memref<8x8x128xf32, #tpu.memory_space<vmem>>, vector<1x8x128xf32>,
    %158 = arith.addi %4, %c4_i32 : i32
    %c7_i32_43 = arith.constant 7 : i32
    %159 = arith.cmpi eq, %158, %c7_i32_43 : i32
    %160 = arith.extui %159 : i1 to i32
    %c0_i32_44 = arith.constant 0 : i32
    %161 = arith.cmpi ne, %160, %c0_i32_44 : i32
    scf.if %161 {
      %c0_75 = arith.constant 0 : index
      %c0_76 = arith.constant 0 : index
      %c0_77 = arith.constant 0 : index
      %257 = vector.load %arg7[%c0_75, %c0_76, %c0_77] : memref<1x8x128xf32, #tpu.memory_space<vmem>>, vector<1x8x128xf32>
      %258 = vector.shape_cast %257 : vector<1x8x128xf32> to vector<8x128xf32>
      %259 = vector.shape_cast %151 : vector<8x128xf32> to vector<1x8x128xf32>
      tpu.vector_store %arg7[%c0_75, %c0_76, %c0_77], %259 {strides = array<i32>} : memref<1x8x128xf32, #tpu.memory_space<vmem>>, vector<1x8x128xf32>,
    } else {
    }
    %c5_i32 = arith.constant 5 : i32
    %162 = arith.index_cast %c5_i32 : i32 to index
    %c0_45 = arith.constant 0 : index
    %c0_46 = arith.constant 0 : index
    %163 = vector.load %arg2[%162, %c0_45, %c0_46] : memref<8x8x512xbf16, #tpu.memory_space<vmem>>, vector<1x8x512xbf16>
    %164 = vector.shape_cast %163 : vector<1x8x512xbf16> to vector<8x512xbf16>
    %165 = arith.extf %164 : vector<8x512xbf16> to vector<8x512xf32>
    %166 = arith.truncf %153 : vector<8x128xf32> to vector<8x128xbf16>
    %cst_47 = arith.constant dense<0.000000e+00> : vector<8x512xf32>
    %167 = tpu.matmul %166, %3, %cst_47 {dimension_numbers = #tpu.dot_dimension_numbers<[1], [0], [0], [1], [0, 0, 1, 1], [], []>} : vector<8x128xbf16>, vector<128x512xbf16>, vector<8x512xf32> -> vector<8x512xf32>
    %168 = arith.addf %165, %167 : vector<8x512xf32>
    %169 = vector.extract_strided_slice %168 {offsets = [0, 0], sizes = [8, 384], strides = [1, 1]} : vector<8x512xf32> to vector<8x384xf32>
    %170 = arith.negf %169 : vector<8x384xf32>
    %171 = math.exp %170 : vector<8x384xf32>
    %cst_48 = arith.constant 1.000000e+00 : f32
    %172 = vector.broadcast %cst_48 : f32 to vector<8x384xf32>
    %173 = arith.addf %172, %171 : vector<8x384xf32>
    %174 = arith.divf %172, %173 : vector<8x384xf32>
    %175 = vector.extract_strided_slice %174 {offsets = [0, 0], sizes = [8, 128], strides = [1, 1]} : vector<8x384xf32> to vector<8x128xf32>
    %176 = vector.extract_strided_slice %174 {offsets = [0, 128], sizes = [8, 128], strides = [1, 1]} : vector<8x384xf32> to vector<8x128xf32>
    %177 = vector.extract_strided_slice %174 {offsets = [0, 256], sizes = [8, 128], strides = [1, 1]} : vector<8x384xf32> to vector<8x128xf32>
    %178 = vector.extract_strided_slice %168 {offsets = [0, 384], sizes = [8, 128], strides = [1, 1]} : vector<8x512xf32> to vector<8x128xf32>
    %179 = math.tanh %178 : vector<8x128xf32>
    %180 = arith.mulf %175, %151 : vector<8x128xf32>
    %181 = arith.mulf %176, %179 : vector<8x128xf32>
    %182 = arith.addf %180, %181 : vector<8x128xf32>
    %183 = math.tanh %182 : vector<8x128xf32>
    %184 = arith.mulf %177, %183 : vector<8x128xf32>
    %185 = arith.index_cast %c5_i32 : i32 to index
    %c0_49 = arith.constant 0 : index
    %c0_50 = arith.constant 0 : index
    %186 = vector.load %arg6[%185, %c0_49, %c0_50] : memref<8x8x128xf32, #tpu.memory_space<vmem>>, vector<1x8x128xf32>
    %187 = vector.shape_cast %186 : vector<1x8x128xf32> to vector<8x128xf32>
    %188 = vector.shape_cast %184 : vector<8x128xf32> to vector<1x8x128xf32>
    tpu.vector_store %arg6[%185, %c0_49, %c0_50], %188 {strides = array<i32>} : memref<8x8x128xf32, #tpu.memory_space<vmem>>, vector<1x8x128xf32>,
    %189 = arith.addi %4, %c5_i32 : i32
    %c7_i32_51 = arith.constant 7 : i32
    %190 = arith.cmpi eq, %189, %c7_i32_51 : i32
    %191 = arith.extui %190 : i1 to i32
    %c0_i32_52 = arith.constant 0 : i32
    %192 = arith.cmpi ne, %191, %c0_i32_52 : i32
    scf.if %192 {
      %c0_75 = arith.constant 0 : index
      %c0_76 = arith.constant 0 : index
      %c0_77 = arith.constant 0 : index
      %257 = vector.load %arg7[%c0_75, %c0_76, %c0_77] : memref<1x8x128xf32, #tpu.memory_space<vmem>>, vector<1x8x128xf32>
      %258 = vector.shape_cast %257 : vector<1x8x128xf32> to vector<8x128xf32>
      %259 = vector.shape_cast %182 : vector<8x128xf32> to vector<1x8x128xf32>
      tpu.vector_store %arg7[%c0_75, %c0_76, %c0_77], %259 {strides = array<i32>} : memref<1x8x128xf32, #tpu.memory_space<vmem>>, vector<1x8x128xf32>,
    } else {
    }
    %c6_i32 = arith.constant 6 : i32
    %193 = arith.index_cast %c6_i32 : i32 to index
    %c0_53 = arith.constant 0 : index
    %c0_54 = arith.constant 0 : index
    %194 = vector.load %arg2[%193, %c0_53, %c0_54] : memref<8x8x512xbf16, #tpu.memory_space<vmem>>, vector<1x8x512xbf16>
    %195 = vector.shape_cast %194 : vector<1x8x512xbf16> to vector<8x512xbf16>
    %196 = arith.extf %195 : vector<8x512xbf16> to vector<8x512xf32>
    %197 = arith.truncf %184 : vector<8x128xf32> to vector<8x128xbf16>
    %cst_55 = arith.constant dense<0.000000e+00> : vector<8x512xf32>
    %198 = tpu.matmul %197, %3, %cst_55 {dimension_numbers = #tpu.dot_dimension_numbers<[1], [0], [0], [1], [0, 0, 1, 1], [], []>} : vector<8x128xbf16>, vector<128x512xbf16>, vector<8x512xf32> -> vector<8x512xf32>
    %199 = arith.addf %196, %198 : vector<8x512xf32>
    %200 = vector.extract_strided_slice %199 {offsets = [0, 0], sizes = [8, 384], strides = [1, 1]} : vector<8x512xf32> to vector<8x384xf32>
    %201 = arith.negf %200 : vector<8x384xf32>
    %202 = math.exp %201 : vector<8x384xf32>
    %cst_56 = arith.constant 1.000000e+00 : f32
    %203 = vector.broadcast %cst_56 : f32 to vector<8x384xf32>
    %204 = arith.addf %203, %202 : vector<8x384xf32>
    %205 = arith.divf %203, %204 : vector<8x384xf32>
    %206 = vector.extract_strided_slice %205 {offsets = [0, 0], sizes = [8, 128], strides = [1, 1]} : vector<8x384xf32> to vector<8x128xf32>
    %207 = vector.extract_strided_slice %205 {offsets = [0, 128], sizes = [8, 128], strides = [1, 1]} : vector<8x384xf32> to vector<8x128xf32>
    %208 = vector.extract_strided_slice %205 {offsets = [0, 256], sizes = [8, 128], strides = [1, 1]} : vector<8x384xf32> to vector<8x128xf32>
    %209 = vector.extract_strided_slice %199 {offsets = [0, 384], sizes = [8, 128], strides = [1, 1]} : vector<8x512xf32> to vector<8x128xf32>
    %210 = math.tanh %209 : vector<8x128xf32>
    %211 = arith.mulf %206, %182 : vector<8x128xf32>
    %212 = arith.mulf %207, %210 : vector<8x128xf32>
    %213 = arith.addf %211, %212 : vector<8x128xf32>
    %214 = math.tanh %213 : vector<8x128xf32>
    %215 = arith.mulf %208, %214 : vector<8x128xf32>
    %216 = arith.index_cast %c6_i32 : i32 to index
    %c0_57 = arith.constant 0 : index
    %c0_58 = arith.constant 0 : index
    %217 = vector.load %arg6[%216, %c0_57, %c0_58] : memref<8x8x128xf32, #tpu.memory_space<vmem>>, vector<1x8x128xf32>
    %218 = vector.shape_cast %217 : vector<1x8x128xf32> to vector<8x128xf32>
    %219 = vector.shape_cast %215 : vector<8x128xf32> to vector<1x8x128xf32>
    tpu.vector_store %arg6[%216, %c0_57, %c0_58], %219 {strides = array<i32>} : memref<8x8x128xf32, #tpu.memory_space<vmem>>, vector<1x8x128xf32>,
    %220 = arith.addi %4, %c6_i32 : i32
    %c7_i32_59 = arith.constant 7 : i32
    %221 = arith.cmpi eq, %220, %c7_i32_59 : i32
    %222 = arith.extui %221 : i1 to i32
    %c0_i32_60 = arith.constant 0 : i32
    %223 = arith.cmpi ne, %222, %c0_i32_60 : i32
    scf.if %223 {
      %c0_75 = arith.constant 0 : index
      %c0_76 = arith.constant 0 : index
      %c0_77 = arith.constant 0 : index
      %257 = vector.load %arg7[%c0_75, %c0_76, %c0_77] : memref<1x8x128xf32, #tpu.memory_space<vmem>>, vector<1x8x128xf32>
      %258 = vector.shape_cast %257 : vector<1x8x128xf32> to vector<8x128xf32>
      %259 = vector.shape_cast %213 : vector<8x128xf32> to vector<1x8x128xf32>
      tpu.vector_store %arg7[%c0_75, %c0_76, %c0_77], %259 {strides = array<i32>} : memref<1x8x128xf32, #tpu.memory_space<vmem>>, vector<1x8x128xf32>,
    } else {
    }
    %c7_i32_61 = arith.constant 7 : i32
    %224 = arith.index_cast %c7_i32_61 : i32 to index
    %c0_62 = arith.constant 0 : index
    %c0_63 = arith.constant 0 : index
    %225 = vector.load %arg2[%224, %c0_62, %c0_63] : memref<8x8x512xbf16, #tpu.memory_space<vmem>>, vector<1x8x512xbf16>
    %226 = vector.shape_cast %225 : vector<1x8x512xbf16> to vector<8x512xbf16>
    %227 = arith.extf %226 : vector<8x512xbf16> to vector<8x512xf32>
    %228 = arith.truncf %215 : vector<8x128xf32> to vector<8x128xbf16>
    %cst_64 = arith.constant dense<0.000000e+00> : vector<8x512xf32>
    %229 = tpu.matmul %228, %3, %cst_64 {dimension_numbers = #tpu.dot_dimension_numbers<[1], [0], [0], [1], [0, 0, 1, 1], [], []>} : vector<8x128xbf16>, vector<128x512xbf16>, vector<8x512xf32> -> vector<8x512xf32>
    %230 = arith.addf %227, %229 : vector<8x512xf32>
    %231 = vector.extract_strided_slice %230 {offsets = [0, 0], sizes = [8, 384], strides = [1, 1]} : vector<8x512xf32> to vector<8x384xf32>
    %232 = arith.negf %231 : vector<8x384xf32>
    %233 = math.exp %232 : vector<8x384xf32>
    %cst_65 = arith.constant 1.000000e+00 : f32
    %234 = vector.broadcast %cst_65 : f32 to vector<8x384xf32>
    %235 = arith.addf %234, %233 : vector<8x384xf32>
    %236 = arith.divf %234, %235 : vector<8x384xf32>
    %237 = vector.extract_strided_slice %236 {offsets = [0, 0], sizes = [8, 128], strides = [1, 1]} : vector<8x384xf32> to vector<8x128xf32>
    %238 = vector.extract_strided_slice %236 {offsets = [0, 128], sizes = [8, 128], strides = [1, 1]} : vector<8x384xf32> to vector<8x128xf32>
    %239 = vector.extract_strided_slice %236 {offsets = [0, 256], sizes = [8, 128], strides = [1, 1]} : vector<8x384xf32> to vector<8x128xf32>
    %240 = vector.extract_strided_slice %230 {offsets = [0, 384], sizes = [8, 128], strides = [1, 1]} : vector<8x512xf32> to vector<8x128xf32>
    %241 = math.tanh %240 : vector<8x128xf32>
    %242 = arith.mulf %237, %213 : vector<8x128xf32>
    %243 = arith.mulf %238, %241 : vector<8x128xf32>
    %244 = arith.addf %242, %243 : vector<8x128xf32>
    %245 = math.tanh %244 : vector<8x128xf32>
    %246 = arith.mulf %239, %245 : vector<8x128xf32>
    %247 = arith.index_cast %c7_i32_61 : i32 to index
    %c0_66 = arith.constant 0 : index
    %c0_67 = arith.constant 0 : index
    %248 = vector.load %arg6[%247, %c0_66, %c0_67] : memref<8x8x128xf32, #tpu.memory_space<vmem>>, vector<1x8x128xf32>
    %249 = vector.shape_cast %248 : vector<1x8x128xf32> to vector<8x128xf32>
    %250 = vector.shape_cast %246 : vector<8x128xf32> to vector<1x8x128xf32>
    tpu.vector_store %arg6[%247, %c0_66, %c0_67], %250 {strides = array<i32>} : memref<8x8x128xf32, #tpu.memory_space<vmem>>, vector<1x8x128xf32>,
    %251 = arith.addi %4, %c7_i32_61 : i32
    %c7_i32_68 = arith.constant 7 : i32
    %252 = arith.cmpi eq, %251, %c7_i32_68 : i32
    %253 = arith.extui %252 : i1 to i32
    %c0_i32_69 = arith.constant 0 : i32
    %254 = arith.cmpi ne, %253, %c0_i32_69 : i32
    scf.if %254 {
      %c0_75 = arith.constant 0 : index
      %c0_76 = arith.constant 0 : index
      %c0_77 = arith.constant 0 : index
      %257 = vector.load %arg7[%c0_75, %c0_76, %c0_77] : memref<1x8x128xf32, #tpu.memory_space<vmem>>, vector<1x8x128xf32>
      %258 = vector.shape_cast %257 : vector<1x8x128xf32> to vector<8x128xf32>
      %259 = vector.shape_cast %244 : vector<8x128xf32> to vector<1x8x128xf32>
      tpu.vector_store %arg7[%c0_75, %c0_76, %c0_77], %259 {strides = array<i32>} : memref<1x8x128xf32, #tpu.memory_space<vmem>>, vector<1x8x128xf32>,
    } else {
    }
    %c8_i32_70 = arith.constant 8 : i32
    %c0_71 = arith.constant 0 : index
    %c0_72 = arith.constant 0 : index
    %255 = vector.load %arg8[%c0_71, %c0_72] : memref<8x128xf32, #tpu.memory_space<vmem>>, vector<8x128xf32>
    tpu.vector_store %arg8[%c0_71, %c0_72], %246 {strides = array<i32>} : memref<8x128xf32, #tpu.memory_space<vmem>>, vector<8x128xf32>,
    %c0_73 = arith.constant 0 : index
    %c0_74 = arith.constant 0 : index
    %256 = vector.load %arg9[%c0_73, %c0_74] : memref<8x128xf32, #tpu.memory_space<vmem>>, vector<8x128xf32>
    tpu.vector_store %arg9[%c0_73, %c0_74], %244 {strides = array<i32>} : memref<8x128xf32, #tpu.memory_space<vmem>>, vector<8x128xf32>,
    return
  }
  func.func @transform_0(%arg0: i32, %arg1: i32) -> (i32, i32, i32) {
    %c0_i32 = arith.constant 0 : i32
    %c0_i32_0 = arith.constant 0 : i32
    return %arg1, %arg0, %c0_i32 : i32, i32, i32
  }
  func.func @transform_1(%arg0: i32, %arg1: i32) -> (i32, i32) {
    %c0_i32 = arith.constant 0 : i32
    %c0_i32_0 = arith.constant 0 : i32
    %c0_i32_1 = arith.constant 0 : i32
    return %c0_i32, %c0_i32_0 : i32, i32
  }
  func.func @transform_2(%arg0: i32, %arg1: i32) -> (i32, i32, i32) {
    %c0_i32 = arith.constant 0 : i32
    %c0_i32_0 = arith.constant 0 : i32
    %c0_i32_1 = arith.constant 0 : i32
    return %c0_i32, %arg0, %c0_i32_0 : i32, i32, i32
  }
  func.func @transform_3(%arg0: i32, %arg1: i32) -> (i32, i32, i32) {
    %c0_i32 = arith.constant 0 : i32
    %c0_i32_0 = arith.constant 0 : i32
    %c0_i32_1 = arith.constant 0 : i32
    return %c0_i32, %arg0, %c0_i32_0 : i32, i32, i32
  }
  func.func @transform_4(%arg0: i32, %arg1: i32) -> (i32, i32, i32) {
    %c0_i32 = arith.constant 0 : i32
    %c0_i32_0 = arith.constant 0 : i32
    return %arg1, %arg0, %c0_i32 : i32, i32, i32
  }
  func.func @transform_5(%arg0: i32, %arg1: i32) -> (i32, i32, i32) {
    %c0_i32 = arith.constant 0 : i32
    %c0_i32_0 = arith.constant 0 : i32
    %c0_i32_1 = arith.constant 0 : i32
    return %c0_i32, %arg0, %c0_i32_0 : i32, i32, i32
  }
}

</mosaic_0001>

<llo_original>
// kernel: tpu_custom_call.1
$region0: #{tpu_custom_call.1}
  #allocation0 [shape = 'u32[]', space=smem, size = 0x4, offset = 0x4, fixed_abs, tag = 'smem constant byte address 0x4 - core index']
  #allocation1 [shape = 'u32[72,128]{1,0:T(1,128)}', space=vmem, size = 0x9000, scoped, tag = 'internal scratch']
  #allocation2 [shape = 'f32[8,128]{1,0:T(8,128)}', space=vmem, size = 0x1000, scoped, tag = 'scratch operand']
  #allocation3 [shape = 'f32[8,128]{1,0:T(8,128)}', space=vmem, size = 0x1000, scoped, tag = 'scratch operand']
  %s0 = inlined_call_operand.hbm [shape: bf16[8,8,512], index: 0, kind: input, shape index: {}]
  %s1 = inlined_call_operand.hbm [shape: bf16[128,512], index: 1, kind: input, shape index: {}]
  %s2 = inlined_call_operand.hbm [shape: f32[1,8,128], index: 2, kind: input, shape index: {}]
  %s3 = inlined_call_operand.hbm [shape: f32[1,8,128], index: 3, kind: input, shape index: {}]
  %s4 = inlined_call_operand.hbm [shape: f32[8,8,128], index: 4, kind: output, shape index: {0}]
  %s5 = inlined_call_operand.hbm [shape: f32[1,8,128], index: 5, kind: output, shape index: {1}]
  %6 = xla_tuple %s4, %s5
  %s7 = sld [smem:[#allocation0]]
  $region86: #{tpu_custom_call.1} parent=0
    _
  %s9 = ssub.s32 1, %s7
  %s10 = scalar_select 0, %s9, %s7
  $region1: #{tpu_custom_call.1} parent=0
    #allocation4 [shape = 'u8[65536]{0}', space=vmem, size = 0x10000, scoped, tag = 'input window, operand 0, single buffered']
    #allocation5 [shape = 's32[1]{0}', space=sflag, size = 0x4, scoped, tag = 'scoped memory for tpu_custom_call.1']
    #allocation6 [shape = 's32[1]{0}', space=sflag, size = 0x4, scoped, tag = 'scoped memory for tpu_custom_call.1']
    #allocation7 [shape = 'u8[131072]{0}', space=vmem, size = 0x20000, scoped, tag = 'input window, operand 1, single buffered']
    #allocation8 [shape = 's32[1]{0}', space=sflag, size = 0x4, scoped, tag = 'scoped memory for tpu_custom_call.1']
    #allocation9 [shape = 'u8[4096]{0}', space=vmem, size = 0x1000, scoped, tag = 'input window, operand 2, single buffered']
    #allocation10 [shape = 'u8[4096]{0}', space=vmem, size = 0x1000, scoped, tag = 'input window, operand 3, single buffered']
    #allocation11 [shape = 's32[1]{0}', space=sflag, size = 0x4, scoped, tag = 'scoped memory for tpu_custom_call.1']
    #allocation12 [shape = 'u8[32768]{0}', space=vmem, size = 0x8000, scoped, tag = 'output window, operand 0, single buffered']
    #allocation13 [shape = 'u8[4096]{0}', space=vmem, size = 0x1000, scoped, tag = 'output window, operand 1, single buffered']
    #allocation14 [shape = 's32[1]{0}', space=sflag, size = 0x4, scoped, tag = 'scoped memory for tpu_custom_call.1']
    %11 = vsyncpa [#allocation5], 0
    %12 = vsyncpa [#allocation8], 0
    %13 = vsyncpa [#allocation11], 0
    %14 = vsyncpa [#allocation6], 0
    %15 = vsyncpa [#allocation14], 0
    // Predicated region
    $region2: #{tpu_custom_call.1} parent=1 // pred_check
      _
    $region3: #{tpu_custom_call.1} parent=1 // pred_check_branch
      %17 = sbr.rel (0) target = $region5
    $region4: #{tpu_custom_call.1} parent=1 // pred_region
      %19 = vsyncadd [#allocation5], 0
      %s20 = sshll.u32 %s0, 4
      %s21 = int_to_ptr.hbm [resolvable:$true] %s20
      %s22 = sshll.u32 [#allocation4], 4
      %s23 = int_to_ptr.vmem [resolvable:$true] %s22
      %28 = dma.hbm_to_vmem [thread:$0]  %s21, 2048, %s23, [#allocation5], 256, 256, 16
    $region5: #{tpu_custom_call.1} parent=1 // pred_fallthru
      _
    // Predicated region
    $region6: #{tpu_custom_call.1} parent=1 // pred_check
      _
    $region7: #{tpu_custom_call.1} parent=1 // pred_check_branch
      %30 = sbr.rel (0) target = $region9
    $region8: #{tpu_custom_call.1} parent=1 // pred_region
      %32 = vsyncadd [#allocation8], 0
      %s33 = sshll.u32 %s1, 4
      %s34 = int_to_ptr.hbm [resolvable:$true] %s33
      %s35 = sshll.u32 [#allocation7], 4
      %s36 = int_to_ptr.vmem [resolvable:$true] %s35
      %41 = dma.hbm_to_vmem [thread:$0]  %s34, 4096, %s36, [#allocation8], 256, 256, 16
    $region9: #{tpu_custom_call.1} parent=1 // pred_fallthru
      _
    // Predicated region
    $region10: #{tpu_custom_call.1} parent=1 // pred_check
      _
    $region11: #{tpu_custom_call.1} parent=1 // pred_check_branch
      %43 = sbr.rel (0) target = $region13
    $region12: #{tpu_custom_call.1} parent=1 // pred_region
      %45 = vsyncadd [#allocation8], 0
      %s47 = sshll.u32 %s2, 4
      %s48 = int_to_ptr.hbm [resolvable:$true] %s47
      %s49 = sshll.u32 [#allocation9], 4
      %s50 = int_to_ptr.vmem [resolvable:$true] %s49
      %52 = dma.hbm_to_vmem [thread:$0]  %s48, 128, %s50, [#allocation8]
    $region13: #{tpu_custom_call.1} parent=1 // pred_fallthru
      _
    // Predicated region
    $region14: #{tpu_custom_call.1} parent=1 // pred_check
      _
    $region15: #{tpu_custom_call.1} parent=1 // pred_check_branch
      %54 = sbr.rel (0) target = $region17
    $region16: #{tpu_custom_call.1} parent=1 // pred_region
      %56 = vsyncadd [#allocation11], 0
      %s58 = sshll.u32 %s3, 4
      %s59 = int_to_ptr.hbm [resolvable:$true] %s58
      %s60 = sshll.u32 [#allocation10], 4
      %s61 = int_to_ptr.vmem [resolvable:$true] %s60
      %63 = dma.hbm_to_vmem [thread:$0]  %s59, 128, %s61, [#allocation11]
    $region17: #{tpu_custom_call.1} parent=1 // pred_fallthru
      _
    // Predicated region
    $region18: #{tpu_custom_call.1} parent=1 // pred_check
      _
    $region19: #{tpu_custom_call.1} parent=1 // pred_check_branch
      %65 = sbr.rel (0) target = $region21
    $region20: #{tpu_custom_call.1} parent=1 // pred_region
      %67 = dma.done [#allocation5], 2048
    $region21: #{tpu_custom_call.1} parent=1 // pred_fallthru
      _
    // Predicated region
    $region22: #{tpu_custom_call.1} parent=1 // pred_check
      _
    $region23: #{tpu_custom_call.1} parent=1 // pred_check_branch
      %69 = sbr.rel (0) target = $region25
    $region24: #{tpu_custom_call.1} parent=1 // pred_region
      %71 = dma.done [#allocation8], 4096
    $region25: #{tpu_custom_call.1} parent=1 // pred_fallthru
      _
    // Predicated region
    $region26: #{tpu_custom_call.1} parent=1 // pred_check
      _
    $region27: #{tpu_custom_call.1} parent=1 // pred_check_branch
      %73 = sbr.rel (0) target = $region29
    $region28: #{tpu_custom_call.1} parent=1 // pred_region
      %75 = dma.done [#allocation8], 128
    $region29: #{tpu_custom_call.1} parent=1 // pred_fallthru
      _
    // Predicated region
    $region30: #{tpu_custom_call.1} parent=1 // pred_check
      _
    $region31: #{tpu_custom_call.1} parent=1 // pred_check_branch
      %77 = sbr.rel (0) target = $region33
    $region32: #{tpu_custom_call.1} parent=1 // pred_region
      %79 = dma.done [#allocation11], 128
    $region33: #{tpu_custom_call.1} parent=1 // pred_fallthru
      _
    %p80 = scmp.eq.s32.totalorder 0, 0
    // Predicated region
    $region34: #{tpu_custom_call.1} parent=1 // pred_check
      %p81 = pneg %p80
    $region35: #{tpu_custom_call.1} parent=1 // pred_check_branch
      %83 = sbr.rel (%p81) target = $region37
    $region36: #{tpu_custom_call.1} parent=1 // pred_region
      %v84 = vld [vmem:[#allocation9] sm:$0xff]
      %85 = vst [vmem:[#allocation2] sm:$0xff] %v84
      %v86 = vld [vmem:[#allocation10] sm:$0xff]
      %87 = vst [vmem:[#allocation3] sm:$0xff] %v86
    $region37: #{tpu_custom_call.1} parent=1 // pred_fallthru
      _
    %v88 = vld [vmem:[#allocation7] sm:$0xff]
    %v89 = vld [vmem:[#allocation7 + $0x8] sm:$0xff]
    %v90 = vld [vmem:[#allocation7 + $0x10] sm:$0xff]
    %v91 = vld [vmem:[#allocation7 + $0x18] sm:$0xff]
    %v92 = vld [vmem:[#allocation7 + $0x20] sm:$0xff]
    %v93 = vld [vmem:[#allocation7 + $0x28] sm:$0xff]
    %v94 = vld [vmem:[#allocation7 + $0x30] sm:$0xff]
    %v95 = vld [vmem:[#allocation7 + $0x38] sm:$0xff]
    %v96 = vld [vmem:[#allocation7 + $0x40] sm:$0xff]
    %v97 = vld [vmem:[#allocation7 + $0x48] sm:$0xff]
    %v98 = vld [vmem:[#allocation7 + $0x50] sm:$0xff]
    %v99 = vld [vmem:[#allocation7 + $0x58] sm:$0xff]
    %v100 = vld [vmem:[#allocation7 + $0x60] sm:$0xff]
    %v101 = vld [vmem:[#allocation7 + $0x68] sm:$0xff]
    %v102 = vld [vmem:[#allocation7 + $0x70] sm:$0xff]
    %v103 = vld [vmem:[#allocation7 + $0x78] sm:$0xff]
    %v104 = vld [vmem:[#allocation7 + $0x80] sm:$0xff]
    %v105 = vld [vmem:[#allocation7 + $0x88] sm:$0xff]
    %v106 = vld [vmem:[#allocation7 + $0x90] sm:$0xff]
    %v107 = vld [vmem:[#allocation7 + $0x98] sm:$0xff]
    %v108 = vld [vmem:[#allocation7 + $0xa0] sm:$0xff]
    %v109 = vld [vmem:[#allocation7 + $0xa8] sm:$0xff]
    %v110 = vld [vmem:[#allocation7 + $0xb0] sm:$0xff]
    %v111 = vld [vmem:[#allocation7 + $0xb8] sm:$0xff]
    %v112 = vld [vmem:[#allocation7 + $0xc0] sm:$0xff]
    %v113 = vld [vmem:[#allocation7 + $0xc8] sm:$0xff]
    %v114 = vld [vmem:[#allocation7 + $0xd0] sm:$0xff]
    %v115 = vld [vmem:[#allocation7 + $0xd8] sm:$0xff]
    %v116 = vld [vmem:[#allocation7 + $0xe0] sm:$0xff]
    %v117 = vld [vmem:[#allocation7 + $0xe8] sm:$0xff]
    %v118 = vld [vmem:[#allocation7 + $0xf0] sm:$0xff]
    %v119 = vld [vmem:[#allocation7 + $0xf8] sm:$0xff]
    %s120 = smul.u32 0, 8
    %v121 = vld [vmem:[#allocation2] sm:$0xff]
    %v122 = vld [vmem:[#allocation3] sm:$0xff]
    %v123 = vld [vmem:[#allocation4] sm:$0xff]
    %v124 = vld [vmem:[#allocation4 + $0x8] sm:$0xff]
    %v125 = vunpack.c.l.bf16 %v123
    %v126 = vunpack.c.h.bf16 %v123
    %v127 = vunpack.c.l.bf16 %v124
    %v128 = vunpack.c.h.bf16 %v124
    %v129 = vpack.c.bf16 %v121, %v121
    %v162 = vunpack.c.l.b16 %v88
    %v163 = vunpack.c.h.b16 %v88
    %v164 = vunpack.c.l.b16 %v89
    %v165 = vunpack.c.h.b16 %v89
    %v166 = vunpack.c.l.b16 %v90
    %v167 = vunpack.c.h.b16 %v90
    %v168 = vunpack.c.l.b16 %v91
    %v169 = vunpack.c.h.b16 %v91
    %v170 = vunpack.c.l.b16 %v92
    %v171 = vunpack.c.h.b16 %v92
    %v172 = vunpack.c.l.b16 %v93
    %v173 = vunpack.c.h.b16 %v93
    %v174 = vunpack.c.l.b16 %v94
    %v175 = vunpack.c.h.b16 %v94
    %v176 = vunpack.c.l.b16 %v95
    %v177 = vunpack.c.h.b16 %v95
    %v178 = vunpack.c.l.b16 %v96
    %v179 = vunpack.c.h.b16 %v96
    %v180 = vunpack.c.l.b16 %v97
    %v181 = vunpack.c.h.b16 %v97
    %v182 = vunpack.c.l.b16 %v98
    %v183 = vunpack.c.h.b16 %v98
    %v184 = vunpack.c.l.b16 %v99
    %v185 = vunpack.c.h.b16 %v99
    %v186 = vunpack.c.l.b16 %v100
    %v187 = vunpack.c.h.b16 %v100
    %v188 = vunpack.c.l.b16 %v101
    %v189 = vunpack.c.h.b16 %v101
    %v190 = vunpack.c.l.b16 %v102
    %v191 = vunpack.c.h.b16 %v102
    %v192 = vunpack.c.l.b16 %v103
    %v193 = vunpack.c.h.b16 %v103
    %v194 = vunpack.c.l.b16 %v104
    %v195 = vunpack.c.h.b16 %v104
    %v196 = vunpack.c.l.b16 %v105
    %v197 = vunpack.c.h.b16 %v105
    %v198 = vunpack.c.l.b16 %v106
    %v199 = vunpack.c.h.b16 %v106
    %v200 = vunpack.c.l.b16 %v107
    %v201 = vunpack.c.h.b16 %v107
    %v202 = vunpack.c.l.b16 %v108
    %v203 = vunpack.c.h.b16 %v108
    %v204 = vunpack.c.l.b16 %v109
    %v205 = vunpack.c.h.b16 %v109
    %v206 = vunpack.c.l.b16 %v110
    %v207 = vunpack.c.h.b16 %v110
    %v208 = vunpack.c.l.b16 %v111
    %v209 = vunpack.c.h.b16 %v111
    %v210 = vunpack.c.l.b16 %v112
    %v211 = vunpack.c.h.b16 %v112
    %v212 = vunpack.c.l.b16 %v113
    %v213 = vunpack.c.h.b16 %v113
    %v214 = vunpack.c.l.b16 %v114
    %v215 = vunpack.c.h.b16 %v114
    %v216 = vunpack.c.l.b16 %v115
    %v217 = vunpack.c.h.b16 %v115
    %v218 = vunpack.c.l.b16 %v116
    %v219 = vunpack.c.h.b16 %v116
    %v220 = vunpack.c.l.b16 %v117
    %v221 = vunpack.c.h.b16 %v117
    %v222 = vunpack.c.l.b16 %v118
    %v223 = vunpack.c.h.b16 %v118
    %v224 = vunpack.c.l.b16 %v119
    %v225 = vunpack.c.h.b16 %v119
    %v226 = vpack.c.b16 %v166, %v162
    %v227 = vpack.c.b16 %v167, %v163
    %v228 = vpack.c.b16 %v168, %v164
    %v229 = vpack.c.b16 %v169, %v165
    %v230 = vpack.c.b16 %v174, %v170
    %v231 = vpack.c.b16 %v175, %v171
    %v232 = vpack.c.b16 %v176, %v172
    %v233 = vpack.c.b16 %v177, %v173
    %v234 = vpack.c.b16 %v182, %v178
    %v235 = vpack.c.b16 %v183, %v179
    %v236 = vpack.c.b16 %v184, %v180
    %v237 = vpack.c.b16 %v185, %v181
    %v238 = vpack.c.b16 %v190, %v186
    %v239 = vpack.c.b16 %v191, %v187
    %v240 = vpack.c.b16 %v192, %v188
    %v241 = vpack.c.b16 %v193, %v189
    %v242 = vpack.c.b16 %v198, %v194
    %v243 = vpack.c.b16 %v199, %v195
    %v244 = vpack.c.b16 %v200, %v196
    %v245 = vpack.c.b16 %v201, %v197
    %v246 = vpack.c.b16 %v206, %v202
    %v247 = vpack.c.b16 %v207, %v203
    %v248 = vpack.c.b16 %v208, %v204
    %v249 = vpack.c.b16 %v209, %v205
    %v250 = vpack.c.b16 %v214, %v210
    %v251 = vpack.c.b16 %v215, %v211
    %v252 = vpack.c.b16 %v216, %v212
    %v253 = vpack.c.b16 %v217, %v213
    %v254 = vpack.c.b16 %v222, %v218
    %v255 = vpack.c.b16 %v223, %v219
    %v256 = vpack.c.b16 %v224, %v220
    %v257 = vpack.c.b16 %v225, %v221
    %290 = vmatpush.bf16.msra.mxu0 %v254
    %291 = vmatpush.bf16.msra.mxu0 %v250
    %292 = vmatpush.bf16.msra.mxu0 %v246
    %293 = vmatpush.bf16.msra.mxu0 %v242
    %294 = vmatpush.bf16.msra.mxu0 %v238
    %295 = vmatpush.bf16.msra.mxu0 %v234
    %296 = vmatpush.bf16.msra.mxu0 %v230
    %297 = vmatpush.bf16.msra.mxu0 %v226
    %298 = vmatmul.bf16.gmra.mxu0 %v129
    %v299 = vpop.f32.mrf.mxu0
    %v300 = vadd.f32 0.0, %v299
    %v301 = vpop.f32.mrf.mxu0
    %302 = vdwg.mxu0
    %303 = vmatpush.bf16.msra.mxu0 %v255
    %304 = vmatpush.bf16.msra.mxu0 %v251
    %305 = vmatpush.bf16.msra.mxu0 %v247
    %306 = vmatpush.bf16.msra.mxu0 %v243
    %307 = vmatpush.bf16.msra.mxu0 %v239
    %308 = vmatpush.bf16.msra.mxu0 %v235
    %309 = vmatpush.bf16.msra.mxu0 %v231
    %310 = vmatpush.bf16.msra.mxu0 %v227
    %311 = vmatmul.bf16.gmra.mxu0 %v129
    %v312 = vpop.f32.mrf.mxu0
    %v313 = vadd.f32 0.0, %v312
    %v314 = vpop.f32.mrf.mxu0
    %315 = vdwg.mxu0
    %316 = vmatpush.bf16.msra.mxu0 %v256
    %317 = vmatpush.bf16.msra.mxu0 %v252
    %318 = vmatpush.bf16.msra.mxu0 %v248
    %319 = vmatpush.bf16.msra.mxu0 %v244
    %320 = vmatpush.bf16.msra.mxu0 %v240
    %321 = vmatpush.bf16.msra.mxu0 %v236
    %322 = vmatpush.bf16.msra.mxu0 %v232
    %323 = vmatpush.bf16.msra.mxu0 %v228
    %324 = vmatmul.bf16.gmra.mxu0 %v129
    %v325 = vpop.f32.mrf.mxu0
    %v326 = vadd.f32 0.0, %v325
    %v327 = vpop.f32.mrf.mxu0
    %328 = vdwg.mxu0
    %329 = vmatpush.bf16.msra.mxu0 %v257
    %330 = vmatpush.bf16.msra.mxu0 %v253
    %331 = vmatpush.bf16.msra.mxu0 %v249
    %332 = vmatpush.bf16.msra.mxu0 %v245
    %333 = vmatpush.bf16.msra.mxu0 %v241
    %334 = vmatpush.bf16.msra.mxu0 %v237
    %335 = vmatpush.bf16.msra.mxu0 %v233
    %336 = vmatpush.bf16.msra.mxu0 %v229
    %337 = vmatmul.bf16.gmra.mxu0 %v129
    %v338 = vpop.f32.mrf.mxu0
    %v339 = vadd.f32 0.0, %v338
    %v340 = vpop.f32.mrf.mxu0
    %341 = vdwg.mxu0
    %v342 = vadd.f32 %v125, %v300
    %v343 = vadd.f32 %v126, %v313
    %v344 = vadd.f32 %v127, %v326
    %v345 = vadd.f32 %v128, %v339
    %v346 = vxor.u32 %v342, 2147483648
    %v347 = vxor.u32 %v343, 2147483648
    %v348 = vxor.u32 %v344, 2147483648
    %v349 = vmul.f32 %v346, 1.442695
    %v350 = vpow.pop %v349
    %v351 = vmul.f32 %v347, 1.442695
    %v352 = vpow.pop %v351
    %v353 = vmul.f32 %v348, 1.442695
    %v354 = vpow.pop %v353
    %v355 = vadd.f32 %v350, 1.0
    %v356 = vadd.f32 %v352, 1.0
    %v357 = vadd.f32 %v354, 1.0
    %v358 = vrcp.pop %v355
    %v359 = vmul.f32 %v355, %v358
    %v360 = vsub.f32 1.0, %v359
    %v361 = vmul.f32 %v358, %v360
    %v362 = vadd.f32 %v358, %v361
    %vm363 = vweird.f32 %v355
    %vm364 = vweird.f32 %v358
    %vm365 = vmor %vm363, %vm364
    %v366 = vsel %vm365, %v358, %v362
    %v367 = vand.u32 2147483647, %v355
    %vm368 = vcmp.eq.f32.partialorder %v367, 8.507059e+37
    %v369 = vand.u32 %v355, 2147483648
    %v370 = vor.u32 1.1754944e-38, %v369
    %v371 = vsel %vm368, %v370, %v366
    %v372 = vmul.f32 1.0, %v371
    %v373 = vrcp.pop %v356
    %v374 = vmul.f32 %v356, %v373
    %v375 = vsub.f32 1.0, %v374
    %v376 = vmul.f32 %v373, %v375
    %v377 = vadd.f32 %v373, %v376
    %vm378 = vweird.f32 %v356
    %vm379 = vweird.f32 %v373
    %vm380 = vmor %vm378, %vm379
    %v381 = vsel %vm380, %v373, %v377
    %v382 = vand.u32 2147483647, %v356
    %vm383 = vcmp.eq.f32.partialorder %v382, 8.507059e+37
    %v384 = vand.u32 %v356, 2147483648
    %v385 = vor.u32 1.1754944e-38, %v384
    %v386 = vsel %vm383, %v385, %v381
    %v387 = vmul.f32 1.0, %v386
    %v388 = vrcp.pop %v357
    %v389 = vmul.f32 %v357, %v388
    %v390 = vsub.f32 1.0, %v389
    %v391 = vmul.f32 %v388, %v390
    %v392 = vadd.f32 %v388, %v391
    %vm393 = vweird.f32 %v357
    %vm394 = vweird.f32 %v388
    %vm395 = vmor %vm393, %vm394
    %v396 = vsel %vm395, %v388, %v392
    %v397 = vand.u32 2147483647, %v357
    %vm398 = vcmp.eq.f32.partialorder %v397, 8.507059e+37
    %v399 = vand.u32 %v357, 2147483648
    %v400 = vor.u32 1.1754944e-38, %v399
    %v401 = vsel %vm398, %v400, %v396
    %v402 = vmul.f32 1.0, %v401
    %v403 = vtanh.pop %v345
    %v404 = vmul.f32 %v372, %v122
    %v405 = vmul.f32 %v387, %v403
    %v406 = vadd.f32 %v404, %v405
    %v407 = vtanh.pop %v406
    %v408 = vmul.f32 %v402, %v407
    %409 = vst [vmem:[#allocation12] sm:$0xff] %v408
    %p410 = scmp.eq.s32.totalorder %s120, 7
    // Predicated region
    $region38: #{tpu_custom_call.1} parent=1 // pred_check
      %p411 = pneg %p410
    $region39: #{tpu_custom_call.1} parent=1 // pred_check_branch
      %413 = sbr.rel (%p411) target = $region41
    $region40: #{tpu_custom_call.1} parent=1 // pred_region
      %414 = vst [vmem:[#allocation13] sm:$0xff] %v406
    $region41: #{tpu_custom_call.1} parent=1 // pred_fallthru
      _
    %s415 = scalar_lea.vmem [#allocation4], 16
    %v416 = vld [vmem:[%s415] sm:$0xff]
    %v417 = vld [vmem:[%s415 + $0x8] sm:$0xff]
    %v418 = vunpack.c.l.bf16 %v416
    %v419 = vunpack.c.h.bf16 %v416
    %v420 = vunpack.c.l.bf16 %v417
    %v421 = vunpack.c.h.bf16 %v417
    %v422 = vpack.c.bf16 %v408, %v408
    %423 = vmatpush.bf16.msra.mxu0 %v254
    %424 = vmatpush.bf16.msra.mxu0 %v250
    %425 = vmatpush.bf16.msra.mxu0 %v246
    %426 = vmatpush.bf16.msra.mxu0 %v242
    %427 = vmatpush.bf16.msra.mxu0 %v238
    %428 = vmatpush.bf16.msra.mxu0 %v234
    %429 = vmatpush.bf16.msra.mxu0 %v230
    %430 = vmatpush.bf16.msra.mxu0 %v226
    %431 = vmatmul.bf16.gmra.mxu0 %v422
    %v432 = vpop.f32.mrf.mxu0
    %v433 = vadd.f32 0.0, %v432
    %v434 = vpop.f32.mrf.mxu0
    %435 = vdwg.mxu0
    %436 = vmatpush.bf16.msra.mxu0 %v255
    %437 = vmatpush.bf16.msra.mxu0 %v251
    %438 = vmatpush.bf16.msra.mxu0 %v247
    %439 = vmatpush.bf16.msra.mxu0 %v243
    %440 = vmatpush.bf16.msra.mxu0 %v239
    %441 = vmatpush.bf16.msra.mxu0 %v235
    %442 = vmatpush.bf16.msra.mxu0 %v231
    %443 = vmatpush.bf16.msra.mxu0 %v227
    %444 = vmatmul.bf16.gmra.mxu0 %v422
    %v445 = vpop.f32.mrf.mxu0
    %v446 = vadd.f32 0.0, %v445
    %v447 = vpop.f32.mrf.mxu0
    %448 = vdwg.mxu0
    %449 = vmatpush.bf16.msra.mxu0 %v256
    %450 = vmatpush.bf16.msra.mxu0 %v252
    %451 = vmatpush.bf16.msra.mxu0 %v248
    %452 = vmatpush.bf16.msra.mxu0 %v244
    %453 = vmatpush.bf16.msra.mxu0 %v240
    %454 = vmatpush.bf16.msra.mxu0 %v236
    %455 = vmatpush.bf16.msra.mxu0 %v232
    %456 = vmatpush.bf16.msra.mxu0 %v228
    %457 = vmatmul.bf16.gmra.mxu0 %v422
    %v458 = vpop.f32.mrf.mxu0
    %v459 = vadd.f32 0.0, %v458
    %v460 = vpop.f32.mrf.mxu0
    %461 = vdwg.mxu0
    %462 = vmatpush.bf16.msra.mxu0 %v257
    %463 = vmatpush.bf16.msra.mxu0 %v253
    %464 = vmatpush.bf16.msra.mxu0 %v249
    %465 = vmatpush.bf16.msra.mxu0 %v245
    %466 = vmatpush.bf16.msra.mxu0 %v241
    %467 = vmatpush.bf16.msra.mxu0 %v237
    %468 = vmatpush.bf16.msra.mxu0 %v233
    %469 = vmatpush.bf16.msra.mxu0 %v229
    %470 = vmatmul.bf16.gmra.mxu0 %v422
    %v471 = vpop.f32.mrf.mxu0
    %v472 = vadd.f32 0.0, %v471
    %v473 = vpop.f32.mrf.mxu0
    %474 = vdwg.mxu0
    %v475 = vadd.f32 %v418, %v433
    %v476 = vadd.f32 %v419, %v446
    %v477 = vadd.f32 %v420, %v459
    %v478 = vadd.f32 %v421, %v472
    %v479 = vxor.u32 %v475, 2147483648
    %v480 = vxor.u32 %v476, 2147483648
    %v481 = vxor.u32 %v477, 2147483648
    %v482 = vmul.f32 %v479, 1.442695
    %v483 = vpow.pop %v482
    %v484 = vmul.f32 %v480, 1.442695
    %v485 = vpow.pop %v484
    %v486 = vmul.f32 %v481, 1.442695
    %v487 = vpow.pop %v486
    %v488 = vadd.f32 %v483, 1.0
    %v489 = vadd.f32 %v485, 1.0
    %v490 = vadd.f32 %v487, 1.0
    %v491 = vrcp.pop %v488
    %v492 = vmul.f32 %v488, %v491
    %v493 = vsub.f32 1.0, %v492
    %v494 = vmul.f32 %v491, %v493
    %v495 = vadd.f32 %v491, %v494
    %vm496 = vweird.f32 %v488
    %vm497 = vweird.f32 %v491
    %vm498 = vmor %vm496, %vm497
    %v499 = vsel %vm498, %v491, %v495
    %v500 = vand.u32 2147483647, %v488
    %vm501 = vcmp.eq.f32.partialorder %v500, 8.507059e+37
    %v502 = vand.u32 %v488, 2147483648
    %v503 = vor.u32 1.1754944e-38, %v502
    %v504 = vsel %vm501, %v503, %v499
    %v505 = vmul.f32 1.0, %v504
    %v506 = vrcp.pop %v489
    %v507 = vmul.f32 %v489, %v506
    %v508 = vsub.f32 1.0, %v507
    %v509 = vmul.f32 %v506, %v508
    %v510 = vadd.f32 %v506, %v509
    %vm511 = vweird.f32 %v489
    %vm512 = vweird.f32 %v506
    %vm513 = vmor %vm511, %vm512
    %v514 = vsel %vm513, %v506, %v510
    %v515 = vand.u32 2147483647, %v489
    %vm516 = vcmp.eq.f32.partialorder %v515, 8.507059e+37
    %v517 = vand.u32 %v489, 2147483648
    %v518 = vor.u32 1.1754944e-38, %v517
    %v519 = vsel %vm516, %v518, %v514
    %v520 = vmul.f32 1.0, %v519
    %v521 = vrcp.pop %v490
    %v522 = vmul.f32 %v490, %v521
    %v523 = vsub.f32 1.0, %v522
    %v524 = vmul.f32 %v521, %v523
    %v525 = vadd.f32 %v521, %v524
    %vm526 = vweird.f32 %v490
    %vm527 = vweird.f32 %v521
    %vm528 = vmor %vm526, %vm527
    %v529 = vsel %vm528, %v521, %v525
    %v530 = vand.u32 2147483647, %v490
    %vm531 = vcmp.eq.f32.partialorder %v530, 8.507059e+37
    %v532 = vand.u32 %v490, 2147483648
    %v533 = vor.u32 1.1754944e-38, %v532
    %v534 = vsel %vm531, %v533, %v529
    %v535 = vmul.f32 1.0, %v534
    %v536 = vtanh.pop %v478
    %v537 = vmul.f32 %v505, %v406
    %v538 = vmul.f32 %v520, %v536
    %v539 = vadd.f32 %v537, %v538
    %v540 = vtanh.pop %v539
    %v541 = vmul.f32 %v535, %v540
    %s542 = scalar_lea.vmem [#allocation12], 8
    %543 = vst [vmem:[%s542] sm:$0xff] %v541
    %s544 = sadd.s32 %s120, 1
    %p545 = scmp.eq.s32.totalorder %s544, 7
    // Predicated region
    $region42: #{tpu_custom_call.1} parent=1 // pred_check
      %p546 = pneg %p545
    $region43: #{tpu_custom_call.1} parent=1 // pred_check_branch
      %548 = sbr.rel (%p546) target = $region45
    $region44: #{tpu_custom_call.1} parent=1 // pred_region
      %549 = vst [vmem:[#allocation13] sm:$0xff] %v539
    $region45: #{tpu_custom_call.1} parent=1 // pred_fallthru
      _
    %s550 = scalar_lea.vmem [#allocation4], 32
    %v551 = vld [vmem:[%s550] sm:$0xff]
    %v552 = vld [vmem:[%s550 + $0x8] sm:$0xff]
    %v553 = vunpack.c.l.bf16 %v551
    %v554 = vunpack.c.h.bf16 %v551
    %v555 = vunpack.c.l.bf16 %v552
    %v556 = vunpack.c.h.bf16 %v552
    %v557 = vpack.c.bf16 %v541, %v541
    %558 = vmatpush.bf16.msra.mxu0 %v254
    %559 = vmatpush.bf16.msra.mxu0 %v250
    %560 = vmatpush.bf16.msra.mxu0 %v246
    %561 = vmatpush.bf16.msra.mxu0 %v242
    %562 = vmatpush.bf16.msra.mxu0 %v238
    %563 = vmatpush.bf16.msra.mxu0 %v234
    %564 = vmatpush.bf16.msra.mxu0 %v230
    %565 = vmatpush.bf16.msra.mxu0 %v226
    %566 = vmatmul.bf16.gmra.mxu0 %v557
    %v567 = vpop.f32.mrf.mxu0
    %v568 = vadd.f32 0.0, %v567
    %v569 = vpop.f32.mrf.mxu0
    %570 = vdwg.mxu0
    %571 = vmatpush.bf16.msra.mxu0 %v255
    %572 = vmatpush.bf16.msra.mxu0 %v251
    %573 = vmatpush.bf16.msra.mxu0 %v247
    %574 = vmatpush.bf16.msra.mxu0 %v243
    %575 = vmatpush.bf16.msra.mxu0 %v239
    %576 = vmatpush.bf16.msra.mxu0 %v235
    %577 = vmatpush.bf16.msra.mxu0 %v231
    %578 = vmatpush.bf16.msra.mxu0 %v227
    %579 = vmatmul.bf16.gmra.mxu0 %v557
    %v580 = vpop.f32.mrf.mxu0
    %v581 = vadd.f32 0.0, %v580
    %v582 = vpop.f32.mrf.mxu0
    %583 = vdwg.mxu0
    %584 = vmatpush.bf16.msra.mxu0 %v256
    %585 = vmatpush.bf16.msra.mxu0 %v252
    %586 = vmatpush.bf16.msra.mxu0 %v248
    %587 = vmatpush.bf16.msra.mxu0 %v244
    %588 = vmatpush.bf16.msra.mxu0 %v240
    %589 = vmatpush.bf16.msra.mxu0 %v236
    %590 = vmatpush.bf16.msra.mxu0 %v232
    %591 = vmatpush.bf16.msra.mxu0 %v228
    %592 = vmatmul.bf16.gmra.mxu0 %v557
    %v593 = vpop.f32.mrf.mxu0
    %v594 = vadd.f32 0.0, %v593
    %v595 = vpop.f32.mrf.mxu0
    %596 = vdwg.mxu0
    %597 = vmatpush.bf16.msra.mxu0 %v257
    %598 = vmatpush.bf16.msra.mxu0 %v253
    %599 = vmatpush.bf16.msra.mxu0 %v249
    %600 = vmatpush.bf16.msra.mxu0 %v245
    %601 = vmatpush.bf16.msra.mxu0 %v241
    %602 = vmatpush.bf16.msra.mxu0 %v237
    %603 = vmatpush.bf16.msra.mxu0 %v233
    %604 = vmatpush.bf16.msra.mxu0 %v229
    %605 = vmatmul.bf16.gmra.mxu0 %v557
    %v606 = vpop.f32.mrf.mxu0
    %v607 = vadd.f32 0.0, %v606
    %v608 = vpop.f32.mrf.mxu0
    %609 = vdwg.mxu0
    %v610 = vadd.f32 %v553, %v568
    %v611 = vadd.f32 %v554, %v581
    %v612 = vadd.f32 %v555, %v594
    %v613 = vadd.f32 %v556, %v607
    %v614 = vxor.u32 %v610, 2147483648
    %v615 = vxor.u32 %v611, 2147483648
    %v616 = vxor.u32 %v612, 2147483648
    %v617 = vmul.f32 %v614, 1.442695
    %v618 = vpow.pop %v617
    %v619 = vmul.f32 %v615, 1.442695
    %v620 = vpow.pop %v619
    %v621 = vmul.f32 %v616, 1.442695
    %v622 = vpow.pop %v621
    %v623 = vadd.f32 %v618, 1.0
    %v624 = vadd.f32 %v620, 1.0
    %v625 = vadd.f32 %v622, 1.0
    %v626 = vrcp.pop %v623
    %v627 = vmul.f32 %v623, %v626
    %v628 = vsub.f32 1.0, %v627
    %v629 = vmul.f32 %v626, %v628
    %v630 = vadd.f32 %v626, %v629
    %vm631 = vweird.f32 %v623
    %vm632 = vweird.f32 %v626
    %vm633 = vmor %vm631, %vm632
    %v634 = vsel %vm633, %v626, %v630
    %v635 = vand.u32 2147483647, %v623
    %vm636 = vcmp.eq.f32.partialorder %v635, 8.507059e+37
    %v637 = vand.u32 %v623, 2147483648
    %v638 = vor.u32 1.1754944e-38, %v637
    %v639 = vsel %vm636, %v638, %v634
    %v640 = vmul.f32 1.0, %v639
    %v641 = vrcp.pop %v624
    %v642 = vmul.f32 %v624, %v641
    %v643 = vsub.f32 1.0, %v642
    %v644 = vmul.f32 %v641, %v643
    %v645 = vadd.f32 %v641, %v644
    %vm646 = vweird.f32 %v624
    %vm647 = vweird.f32 %v641
    %vm648 = vmor %vm646, %vm647
    %v649 = vsel %vm648, %v641, %v645
    %v650 = vand.u32 2147483647, %v624
    %vm651 = vcmp.eq.f32.partialorder %v650, 8.507059e+37
    %v652 = vand.u32 %v624, 2147483648
    %v653 = vor.u32 1.1754944e-38, %v652
    %v654 = vsel %vm651, %v653, %v649
    %v655 = vmul.f32 1.0, %v654
    %v656 = vrcp.pop %v625
    %v657 = vmul.f32 %v625, %v656
    %v658 = vsub.f32 1.0, %v657
    %v659 = vmul.f32 %v656, %v658
    %v660 = vadd.f32 %v656, %v659
    %vm661 = vweird.f32 %v625
    %vm662 = vweird.f32 %v656
    %vm663 = vmor %vm661, %vm662
    %v664 = vsel %vm663, %v656, %v660
    %v665 = vand.u32 2147483647, %v625
    %vm666 = vcmp.eq.f32.partialorder %v665, 8.507059e+37
    %v667 = vand.u32 %v625, 2147483648
    %v668 = vor.u32 1.1754944e-38, %v667
    %v669 = vsel %vm666, %v668, %v664
    %v670 = vmul.f32 1.0, %v669
    %v671 = vtanh.pop %v613
    %v672 = vmul.f32 %v640, %v539
    %v673 = vmul.f32 %v655, %v671
    %v674 = vadd.f32 %v672, %v673
    %v675 = vtanh.pop %v674
    %v676 = vmul.f32 %v670, %v675
    %s677 = scalar_lea.vmem [#allocation12], 16
    %678 = vst [vmem:[%s677] sm:$0xff] %v676
    %s679 = sadd.s32 %s120, 2
    %p680 = scmp.eq.s32.totalorder %s679, 7
    // Predicated region
    $region46: #{tpu_custom_call.1} parent=1 // pred_check
      %p681 = pneg %p680
    $region47: #{tpu_custom_call.1} parent=1 // pred_check_branch
      %683 = sbr.rel (%p681) target = $region49
    $region48: #{tpu_custom_call.1} parent=1 // pred_region
      %684 = vst [vmem:[#allocation13] sm:$0xff] %v674
    $region49: #{tpu_custom_call.1} parent=1 // pred_fallthru
      _
    %s685 = scalar_lea.vmem [#allocation4], 48
    %v686 = vld [vmem:[%s685] sm:$0xff]
    %v687 = vld [vmem:[%s685 + $0x8] sm:$0xff]
    %v688 = vunpack.c.l.bf16 %v686
    %v689 = vunpack.c.h.bf16 %v686
    %v690 = vunpack.c.l.bf16 %v687
    %v691 = vunpack.c.h.bf16 %v687
    %v692 = vpack.c.bf16 %v676, %v676
    %693 = vmatpush.bf16.msra.mxu0 %v254
    %694 = vmatpush.bf16.msra.mxu0 %v250
    %695 = vmatpush.bf16.msra.mxu0 %v246
    %696 = vmatpush.bf16.msra.mxu0 %v242
    %697 = vmatpush.bf16.msra.mxu0 %v238
    %698 = vmatpush.bf16.msra.mxu0 %v234
    %699 = vmatpush.bf16.msra.mxu0 %v230
    %700 = vmatpush.bf16.msra.mxu0 %v226
    %701 = vmatmul.bf16.gmra.mxu0 %v692
    %v702 = vpop.f32.mrf.mxu0
    %v703 = vadd.f32 0.0, %v702
    %v704 = vpop.f32.mrf.mxu0
    %705 = vdwg.mxu0
    %706 = vmatpush.bf16.msra.mxu0 %v255
    %707 = vmatpush.bf16.msra.mxu0 %v251
    %708 = vmatpush.bf16.msra.mxu0 %v247
    %709 = vmatpush.bf16.msra.mxu0 %v243
    %710 = vmatpush.bf16.msra.mxu0 %v239
    %711 = vmatpush.bf16.msra.mxu0 %v235
    %712 = vmatpush.bf16.msra.mxu0 %v231
    %713 = vmatpush.bf16.msra.mxu0 %v227
    %714 = vmatmul.bf16.gmra.mxu0 %v692
    %v715 = vpop.f32.mrf.mxu0
    %v716 = vadd.f32 0.0, %v715
    %v717 = vpop.f32.mrf.mxu0
    %718 = vdwg.mxu0
    %719 = vmatpush.bf16.msra.mxu0 %v256
    %720 = vmatpush.bf16.msra.mxu0 %v252
    %721 = vmatpush.bf16.msra.mxu0 %v248
    %722 = vmatpush.bf16.msra.mxu0 %v244
    %723 = vmatpush.bf16.msra.mxu0 %v240
    %724 = vmatpush.bf16.msra.mxu0 %v236
    %725 = vmatpush.bf16.msra.mxu0 %v232
    %726 = vmatpush.bf16.msra.mxu0 %v228
    %727 = vmatmul.bf16.gmra.mxu0 %v692
    %v728 = vpop.f32.mrf.mxu0
    %v729 = vadd.f32 0.0, %v728
    %v730 = vpop.f32.mrf.mxu0
    %731 = vdwg.mxu0
    %732 = vmatpush.bf16.msra.mxu0 %v257
    %733 = vmatpush.bf16.msra.mxu0 %v253
    %734 = vmatpush.bf16.msra.mxu0 %v249
    %735 = vmatpush.bf16.msra.mxu0 %v245
    %736 = vmatpush.bf16.msra.mxu0 %v241
    %737 = vmatpush.bf16.msra.mxu0 %v237
    %738 = vmatpush.bf16.msra.mxu0 %v233
    %739 = vmatpush.bf16.msra.mxu0 %v229
    %740 = vmatmul.bf16.gmra.mxu0 %v692
    %v741 = vpop.f32.mrf.mxu0
    %v742 = vadd.f32 0.0, %v741
    %v743 = vpop.f32.mrf.mxu0
    %744 = vdwg.mxu0
    %v745 = vadd.f32 %v688, %v703
    %v746 = vadd.f32 %v689, %v716
    %v747 = vadd.f32 %v690, %v729
    %v748 = vadd.f32 %v691, %v742
    %v749 = vxor.u32 %v745, 2147483648
    %v750 = vxor.u32 %v746, 2147483648
    %v751 = vxor.u32 %v747, 2147483648
    %v752 = vmul.f32 %v749, 1.442695
    %v753 = vpow.pop %v752
    %v754 = vmul.f32 %v750, 1.442695
    %v755 = vpow.pop %v754
    %v756 = vmul.f32 %v751, 1.442695
    %v757 = vpow.pop %v756
    %v758 = vadd.f32 %v753, 1.0
    %v759 = vadd.f32 %v755, 1.0
    %v760 = vadd.f32 %v757, 1.0
    %v761 = vrcp.pop %v758
    %v762 = vmul.f32 %v758, %v761
    %v763 = vsub.f32 1.0, %v762
    %v764 = vmul.f32 %v761, %v763
    %v765 = vadd.f32 %v761, %v764
    %vm766 = vweird.f32 %v758
    %vm767 = vweird.f32 %v761
    %vm768 = vmor %vm766, %vm767
    %v769 = vsel %vm768, %v761, %v765
    %v770 = vand.u32 2147483647, %v758
    %vm771 = vcmp.eq.f32.partialorder %v770, 8.507059e+37
    %v772 = vand.u32 %v758, 2147483648
    %v773 = vor.u32 1.1754944e-38, %v772
    %v774 = vsel %vm771, %v773, %v769
    %v775 = vmul.f32 1.0, %v774
    %v776 = vrcp.pop %v759
    %v777 = vmul.f32 %v759, %v776
    %v778 = vsub.f32 1.0, %v777
    %v779 = vmul.f32 %v776, %v778
    %v780 = vadd.f32 %v776, %v779
    %vm781 = vweird.f32 %v759
    %vm782 = vweird.f32 %v776
    %vm783 = vmor %vm781, %vm782
    %v784 = vsel %vm783, %v776, %v780
    %v785 = vand.u32 2147483647, %v759
    %vm786 = vcmp.eq.f32.partialorder %v785, 8.507059e+37
    %v787 = vand.u32 %v759, 2147483648
    %v788 = vor.u32 1.1754944e-38, %v787
    %v789 = vsel %vm786, %v788, %v784
    %v790 = vmul.f32 1.0, %v789
    %v791 = vrcp.pop %v760
    %v792 = vmul.f32 %v760, %v791
    %v793 = vsub.f32 1.0, %v792
    %v794 = vmul.f32 %v791, %v793
    %v795 = vadd.f32 %v791, %v794
    %vm796 = vweird.f32 %v760
    %vm797 = vweird.f32 %v791
    %vm798 = vmor %vm796, %vm797
    %v799 = vsel %vm798, %v791, %v795
    %v800 = vand.u32 2147483647, %v760
    %vm801 = vcmp.eq.f32.partialorder %v800, 8.507059e+37
    %v802 = vand.u32 %v760, 2147483648
    %v803 = vor.u32 1.1754944e-38, %v802
    %v804 = vsel %vm801, %v803, %v799
    %v805 = vmul.f32 1.0, %v804
    %v806 = vtanh.pop %v748
    %v807 = vmul.f32 %v775, %v674
    %v808 = vmul.f32 %v790, %v806
    %v809 = vadd.f32 %v807, %v808
    %v810 = vtanh.pop %v809
    %v811 = vmul.f32 %v805, %v810
    %s812 = scalar_lea.vmem [#allocation12], 24
    %813 = vst [vmem:[%s812] sm:$0xff] %v811
    %s814 = sadd.s32 %s120, 3
    %p815 = scmp.eq.s32.totalorder %s814, 7
    // Predicated region
    $region50: #{tpu_custom_call.1} parent=1 // pred_check
      %p816 = pneg %p815
    $region51: #{tpu_custom_call.1} parent=1 // pred_check_branch
      %818 = sbr.rel (%p816) target = $region53
    $region52: #{tpu_custom_call.1} parent=1 // pred_region
      %819 = vst [vmem:[#allocation13] sm:$0xff] %v809
    $region53: #{tpu_custom_call.1} parent=1 // pred_fallthru
      _
    %s820 = scalar_lea.vmem [#allocation4], 64
    %v821 = vld [vmem:[%s820] sm:$0xff]
    %v822 = vld [vmem:[%s820 + $0x8] sm:$0xff]
    %v823 = vunpack.c.l.bf16 %v821
    %v824 = vunpack.c.h.bf16 %v821
    %v825 = vunpack.c.l.bf16 %v822
    %v826 = vunpack.c.h.bf16 %v822
    %v827 = vpack.c.bf16 %v811, %v811
    %828 = vmatpush.bf16.msra.mxu0 %v254
    %829 = vmatpush.bf16.msra.mxu0 %v250
    %830 = vmatpush.bf16.msra.mxu0 %v246
    %831 = vmatpush.bf16.msra.mxu0 %v242
    %832 = vmatpush.bf16.msra.mxu0 %v238
    %833 = vmatpush.bf16.msra.mxu0 %v234
    %834 = vmatpush.bf16.msra.mxu0 %v230
    %835 = vmatpush.bf16.msra.mxu0 %v226
    %836 = vmatmul.bf16.gmra.mxu0 %v827
    %v837 = vpop.f32.mrf.mxu0
    %v838 = vadd.f32 0.0, %v837
    %v839 = vpop.f32.mrf.mxu0
    %840 = vdwg.mxu0
    %841 = vmatpush.bf16.msra.mxu0 %v255
    %842 = vmatpush.bf16.msra.mxu0 %v251
    %843 = vmatpush.bf16.msra.mxu0 %v247
    %844 = vmatpush.bf16.msra.mxu0 %v243
    %845 = vmatpush.bf16.msra.mxu0 %v239
    %846 = vmatpush.bf16.msra.mxu0 %v235
    %847 = vmatpush.bf16.msra.mxu0 %v231
    %848 = vmatpush.bf16.msra.mxu0 %v227
    %849 = vmatmul.bf16.gmra.mxu0 %v827
    %v850 = vpop.f32.mrf.mxu0
    %v851 = vadd.f32 0.0, %v850
    %v852 = vpop.f32.mrf.mxu0
    %853 = vdwg.mxu0
    %854 = vmatpush.bf16.msra.mxu0 %v256
    %855 = vmatpush.bf16.msra.mxu0 %v252
    %856 = vmatpush.bf16.msra.mxu0 %v248
    %857 = vmatpush.bf16.msra.mxu0 %v244
    %858 = vmatpush.bf16.msra.mxu0 %v240
    %859 = vmatpush.bf16.msra.mxu0 %v236
    %860 = vmatpush.bf16.msra.mxu0 %v232
    %861 = vmatpush.bf16.msra.mxu0 %v228
    %862 = vmatmul.bf16.gmra.mxu0 %v827
    %v863 = vpop.f32.mrf.mxu0
    %v864 = vadd.f32 0.0, %v863
    %v865 = vpop.f32.mrf.mxu0
    %866 = vdwg.mxu0
    %867 = vmatpush.bf16.msra.mxu0 %v257
    %868 = vmatpush.bf16.msra.mxu0 %v253
    %869 = vmatpush.bf16.msra.mxu0 %v249
    %870 = vmatpush.bf16.msra.mxu0 %v245
    %871 = vmatpush.bf16.msra.mxu0 %v241
    %872 = vmatpush.bf16.msra.mxu0 %v237
    %873 = vmatpush.bf16.msra.mxu0 %v233
    %874 = vmatpush.bf16.msra.mxu0 %v229
    %875 = vmatmul.bf16.gmra.mxu0 %v827
    %v876 = vpop.f32.mrf.mxu0
    %v877 = vadd.f32 0.0, %v876
    %v878 = vpop.f32.mrf.mxu0
    %879 = vdwg.mxu0
    %v880 = vadd.f32 %v823, %v838
    %v881 = vadd.f32 %v824, %v851
    %v882 = vadd.f32 %v825, %v864
    %v883 = vadd.f32 %v826, %v877
    %v884 = vxor.u32 %v880, 2147483648
    %v885 = vxor.u32 %v881, 2147483648
    %v886 = vxor.u32 %v882, 2147483648
    %v887 = vmul.f32 %v884, 1.442695
    %v888 = vpow.pop %v887
    %v889 = vmul.f32 %v885, 1.442695
    %v890 = vpow.pop %v889
    %v891 = vmul.f32 %v886, 1.442695
    %v892 = vpow.pop %v891
    %v893 = vadd.f32 %v888, 1.0
    %v894 = vadd.f32 %v890, 1.0
    %v895 = vadd.f32 %v892, 1.0
    %v896 = vrcp.pop %v893
    %v897 = vmul.f32 %v893, %v896
    %v898 = vsub.f32 1.0, %v897
    %v899 = vmul.f32 %v896, %v898
    %v900 = vadd.f32 %v896, %v899
    %vm901 = vweird.f32 %v893
    %vm902 = vweird.f32 %v896
    %vm903 = vmor %vm901, %vm902
    %v904 = vsel %vm903, %v896, %v900
    %v905 = vand.u32 2147483647, %v893
    %vm906 = vcmp.eq.f32.partialorder %v905, 8.507059e+37
    %v907 = vand.u32 %v893, 2147483648
    %v908 = vor.u32 1.1754944e-38, %v907
    %v909 = vsel %vm906, %v908, %v904
    %v910 = vmul.f32 1.0, %v909
    %v911 = vrcp.pop %v894
    %v912 = vmul.f32 %v894, %v911
    %v913 = vsub.f32 1.0, %v912
    %v914 = vmul.f32 %v911, %v913
    %v915 = vadd.f32 %v911, %v914
    %vm916 = vweird.f32 %v894
    %vm917 = vweird.f32 %v911
    %vm918 = vmor %vm916, %vm917
    %v919 = vsel %vm918, %v911, %v915
    %v920 = vand.u32 2147483647, %v894
    %vm921 = vcmp.eq.f32.partialorder %v920, 8.507059e+37
    %v922 = vand.u32 %v894, 2147483648
    %v923 = vor.u32 1.1754944e-38, %v922
    %v924 = vsel %vm921, %v923, %v919
    %v925 = vmul.f32 1.0, %v924
    %v926 = vrcp.pop %v895
    %v927 = vmul.f32 %v895, %v926
    %v928 = vsub.f32 1.0, %v927
    %v929 = vmul.f32 %v926, %v928
    %v930 = vadd.f32 %v926, %v929
    %vm931 = vweird.f32 %v895
    %vm932 = vweird.f32 %v926
    %vm933 = vmor %vm931, %vm932
    %v934 = vsel %vm933, %v926, %v930
    %v935 = vand.u32 2147483647, %v895
    %vm936 = vcmp.eq.f32.partialorder %v935, 8.507059e+37
    %v937 = vand.u32 %v895, 2147483648
    %v938 = vor.u32 1.1754944e-38, %v937
    %v939 = vsel %vm936, %v938, %v934
    %v940 = vmul.f32 1.0, %v939
    %v941 = vtanh.pop %v883
    %v942 = vmul.f32 %v910, %v809
    %v943 = vmul.f32 %v925, %v941
    %v944 = vadd.f32 %v942, %v943
    %v945 = vtanh.pop %v944
    %v946 = vmul.f32 %v940, %v945
    %s947 = scalar_lea.vmem [#allocation12], 32
    %948 = vst [vmem:[%s947] sm:$0xff] %v946
    %s949 = sadd.s32 %s120, 4
    %p950 = scmp.eq.s32.totalorder %s949, 7
    // Predicated region
    $region54: #{tpu_custom_call.1} parent=1 // pred_check
      %p951 = pneg %p950
    $region55: #{tpu_custom_call.1} parent=1 // pred_check_branch
      %953 = sbr.rel (%p951) target = $region57
    $region56: #{tpu_custom_call.1} parent=1 // pred_region
      %954 = vst [vmem:[#allocation13] sm:$0xff] %v944
    $region57: #{tpu_custom_call.1} parent=1 // pred_fallthru
      _
    %s955 = scalar_lea.vmem [#allocation4], 80
    %v956 = vld [vmem:[%s955] sm:$0xff]
    %v957 = vld [vmem:[%s955 + $0x8] sm:$0xff]
    %v958 = vunpack.c.l.bf16 %v956
    %v959 = vunpack.c.h.bf16 %v956
    %v960 = vunpack.c.l.bf16 %v957
    %v961 = vunpack.c.h.bf16 %v957
    %v962 = vpack.c.bf16 %v946, %v946
    %963 = vmatpush.bf16.msra.mxu0 %v254
    %964 = vmatpush.bf16.msra.mxu0 %v250
    %965 = vmatpush.bf16.msra.mxu0 %v246
    %966 = vmatpush.bf16.msra.mxu0 %v242
    %967 = vmatpush.bf16.msra.mxu0 %v238
    %968 = vmatpush.bf16.msra.mxu0 %v234
    %969 = vmatpush.bf16.msra.mxu0 %v230
    %970 = vmatpush.bf16.msra.mxu0 %v226
    %971 = vmatmul.bf16.gmra.mxu0 %v962
    %v972 = vpop.f32.mrf.mxu0
    %v973 = vadd.f32 0.0, %v972
    %v974 = vpop.f32.mrf.mxu0
    %975 = vdwg.mxu0
    %976 = vmatpush.bf16.msra.mxu0 %v255
    %977 = vmatpush.bf16.msra.mxu0 %v251
    %978 = vmatpush.bf16.msra.mxu0 %v247
    %979 = vmatpush.bf16.msra.mxu0 %v243
    %980 = vmatpush.bf16.msra.mxu0 %v239
    %981 = vmatpush.bf16.msra.mxu0 %v235
    %982 = vmatpush.bf16.msra.mxu0 %v231
    %983 = vmatpush.bf16.msra.mxu0 %v227
    %984 = vmatmul.bf16.gmra.mxu0 %v962
    %v985 = vpop.f32.mrf.mxu0
    %v986 = vadd.f32 0.0, %v985
    %v987 = vpop.f32.mrf.mxu0
    %988 = vdwg.mxu0
    %989 = vmatpush.bf16.msra.mxu0 %v256
    %990 = vmatpush.bf16.msra.mxu0 %v252
    %991 = vmatpush.bf16.msra.mxu0 %v248
    %992 = vmatpush.bf16.msra.mxu0 %v244
    %993 = vmatpush.bf16.msra.mxu0 %v240
    %994 = vmatpush.bf16.msra.mxu0 %v236
    %995 = vmatpush.bf16.msra.mxu0 %v232
    %996 = vmatpush.bf16.msra.mxu0 %v228
    %997 = vmatmul.bf16.gmra.mxu0 %v962
    %v998 = vpop.f32.mrf.mxu0
    %v999 = vadd.f32 0.0, %v998
    %v1000 = vpop.f32.mrf.mxu0
    %1001 = vdwg.mxu0
    %1002 = vmatpush.bf16.msra.mxu0 %v257
    %1003 = vmatpush.bf16.msra.mxu0 %v253
    %1004 = vmatpush.bf16.msra.mxu0 %v249
    %1005 = vmatpush.bf16.msra.mxu0 %v245
    %1006 = vmatpush.bf16.msra.mxu0 %v241
    %1007 = vmatpush.bf16.msra.mxu0 %v237
    %1008 = vmatpush.bf16.msra.mxu0 %v233
    %1009 = vmatpush.bf16.msra.mxu0 %v229
    %1010 = vmatmul.bf16.gmra.mxu0 %v962
    %v1011 = vpop.f32.mrf.mxu0
    %v1012 = vadd.f32 0.0, %v1011
    %v1013 = vpop.f32.mrf.mxu0
    %1014 = vdwg.mxu0
    %v1015 = vadd.f32 %v958, %v973
    %v1016 = vadd.f32 %v959, %v986
    %v1017 = vadd.f32 %v960, %v999
    %v1018 = vadd.f32 %v961, %v1012
    %v1019 = vxor.u32 %v1015, 2147483648
    %v1020 = vxor.u32 %v1016, 2147483648
    %v1021 = vxor.u32 %v1017, 2147483648
    %v1022 = vmul.f32 %v1019, 1.442695
    %v1023 = vpow.pop %v1022
    %v1024 = vmul.f32 %v1020, 1.442695
    %v1025 = vpow.pop %v1024
    %v1026 = vmul.f32 %v1021, 1.442695
    %v1027 = vpow.pop %v1026
    %v1028 = vadd.f32 %v1023, 1.0
    %v1029 = vadd.f32 %v1025, 1.0
    %v1030 = vadd.f32 %v1027, 1.0
    %v1031 = vrcp.pop %v1028
    %v1032 = vmul.f32 %v1028, %v1031
    %v1033 = vsub.f32 1.0, %v1032
    %v1034 = vmul.f32 %v1031, %v1033
    %v1035 = vadd.f32 %v1031, %v1034
    %vm1036 = vweird.f32 %v1028
    %vm1037 = vweird.f32 %v1031
    %vm1038 = vmor %vm1036, %vm1037
    %v1039 = vsel %vm1038, %v1031, %v1035
    %v1040 = vand.u32 2147483647, %v1028
    %vm1041 = vcmp.eq.f32.partialorder %v1040, 8.507059e+37
    %v1042 = vand.u32 %v1028, 2147483648
    %v1043 = vor.u32 1.1754944e-38, %v1042
    %v1044 = vsel %vm1041, %v1043, %v1039
    %v1045 = vmul.f32 1.0, %v1044
    %v1046 = vrcp.pop %v1029
    %v1047 = vmul.f32 %v1029, %v1046
    %v1048 = vsub.f32 1.0, %v1047
    %v1049 = vmul.f32 %v1046, %v1048
    %v1050 = vadd.f32 %v1046, %v1049
    %vm1051 = vweird.f32 %v1029
    %vm1052 = vweird.f32 %v1046
    %vm1053 = vmor %vm1051, %vm1052
    %v1054 = vsel %vm1053, %v1046, %v1050
    %v1055 = vand.u32 2147483647, %v1029
    %vm1056 = vcmp.eq.f32.partialorder %v1055, 8.507059e+37
    %v1057 = vand.u32 %v1029, 2147483648
    %v1058 = vor.u32 1.1754944e-38, %v1057
    %v1059 = vsel %vm1056, %v1058, %v1054
    %v1060 = vmul.f32 1.0, %v1059
    %v1061 = vrcp.pop %v1030
    %v1062 = vmul.f32 %v1030, %v1061
    %v1063 = vsub.f32 1.0, %v1062
    %v1064 = vmul.f32 %v1061, %v1063
    %v1065 = vadd.f32 %v1061, %v1064
    %vm1066 = vweird.f32 %v1030
    %vm1067 = vweird.f32 %v1061
    %vm1068 = vmor %vm1066, %vm1067
    %v1069 = vsel %vm1068, %v1061, %v1065
    %v1070 = vand.u32 2147483647, %v1030
    %vm1071 = vcmp.eq.f32.partialorder %v1070, 8.507059e+37
    %v1072 = vand.u32 %v1030, 2147483648
    %v1073 = vor.u32 1.1754944e-38, %v1072
    %v1074 = vsel %vm1071, %v1073, %v1069
    %v1075 = vmul.f32 1.0, %v1074
    %v1076 = vtanh.pop %v1018
    %v1077 = vmul.f32 %v1045, %v944
    %v1078 = vmul.f32 %v1060, %v1076
    %v1079 = vadd.f32 %v1077, %v1078
    %v1080 = vtanh.pop %v1079
    %v1081 = vmul.f32 %v1075, %v1080
    %s1082 = scalar_lea.vmem [#allocation12], 40
    %1083 = vst [vmem:[%s1082] sm:$0xff] %v1081
    %s1084 = sadd.s32 %s120, 5
    %p1085 = scmp.eq.s32.totalorder %s1084, 7
    // Predicated region
    $region58: #{tpu_custom_call.1} parent=1 // pred_check
      %p1086 = pneg %p1085
    $region59: #{tpu_custom_call.1} parent=1 // pred_check_branch
      %1088 = sbr.rel (%p1086) target = $region61
    $region60: #{tpu_custom_call.1} parent=1 // pred_region
      %1089 = vst [vmem:[#allocation13] sm:$0xff] %v1079
    $region61: #{tpu_custom_call.1} parent=1 // pred_fallthru
      _
    %s1090 = scalar_lea.vmem [#allocation4], 96
    %v1091 = vld [vmem:[%s1090] sm:$0xff]
    %v1092 = vld [vmem:[%s1090 + $0x8] sm:$0xff]
    %v1093 = vunpack.c.l.bf16 %v1091
    %v1094 = vunpack.c.h.bf16 %v1091
    %v1095 = vunpack.c.l.bf16 %v1092
    %v1096 = vunpack.c.h.bf16 %v1092
    %v1097 = vpack.c.bf16 %v1081, %v1081
    %1098 = vmatpush.bf16.msra.mxu0 %v254
    %1099 = vmatpush.bf16.msra.mxu0 %v250
    %1100 = vmatpush.bf16.msra.mxu0 %v246
    %1101 = vmatpush.bf16.msra.mxu0 %v242
    %1102 = vmatpush.bf16.msra.mxu0 %v238
    %1103 = vmatpush.bf16.msra.mxu0 %v234
    %1104 = vmatpush.bf16.msra.mxu0 %v230
    %1105 = vmatpush.bf16.msra.mxu0 %v226
    %1106 = vmatmul.bf16.gmra.mxu0 %v1097
    %v1107 = vpop.f32.mrf.mxu0
    %v1108 = vadd.f32 0.0, %v1107
    %v1109 = vpop.f32.mrf.mxu0
    %1110 = vdwg.mxu0
    %1111 = vmatpush.bf16.msra.mxu0 %v255
    %1112 = vmatpush.bf16.msra.mxu0 %v251
    %1113 = vmatpush.bf16.msra.mxu0 %v247
    %1114 = vmatpush.bf16.msra.mxu0 %v243
    %1115 = vmatpush.bf16.msra.mxu0 %v239
    %1116 = vmatpush.bf16.msra.mxu0 %v235
    %1117 = vmatpush.bf16.msra.mxu0 %v231
    %1118 = vmatpush.bf16.msra.mxu0 %v227
    %1119 = vmatmul.bf16.gmra.mxu0 %v1097
    %v1120 = vpop.f32.mrf.mxu0
    %v1121 = vadd.f32 0.0, %v1120
    %v1122 = vpop.f32.mrf.mxu0
    %1123 = vdwg.mxu0
    %1124 = vmatpush.bf16.msra.mxu0 %v256
    %1125 = vmatpush.bf16.msra.mxu0 %v252
    %1126 = vmatpush.bf16.msra.mxu0 %v248
    %1127 = vmatpush.bf16.msra.mxu0 %v244
    %1128 = vmatpush.bf16.msra.mxu0 %v240
    %1129 = vmatpush.bf16.msra.mxu0 %v236
    %1130 = vmatpush.bf16.msra.mxu0 %v232
    %1131 = vmatpush.bf16.msra.mxu0 %v228
    %1132 = vmatmul.bf16.gmra.mxu0 %v1097
    %v1133 = vpop.f32.mrf.mxu0
    %v1134 = vadd.f32 0.0, %v1133
    %v1135 = vpop.f32.mrf.mxu0
    %1136 = vdwg.mxu0
    %1137 = vmatpush.bf16.msra.mxu0 %v257
    %1138 = vmatpush.bf16.msra.mxu0 %v253
    %1139 = vmatpush.bf16.msra.mxu0 %v249
    %1140 = vmatpush.bf16.msra.mxu0 %v245
    %1141 = vmatpush.bf16.msra.mxu0 %v241
    %1142 = vmatpush.bf16.msra.mxu0 %v237
    %1143 = vmatpush.bf16.msra.mxu0 %v233
    %1144 = vmatpush.bf16.msra.mxu0 %v229
    %1145 = vmatmul.bf16.gmra.mxu0 %v1097
    %v1146 = vpop.f32.mrf.mxu0
    %v1147 = vadd.f32 0.0, %v1146
    %v1148 = vpop.f32.mrf.mxu0
    %1149 = vdwg.mxu0
    %v1150 = vadd.f32 %v1093, %v1108
    %v1151 = vadd.f32 %v1094, %v1121
    %v1152 = vadd.f32 %v1095, %v1134
    %v1153 = vadd.f32 %v1096, %v1147
    %v1154 = vxor.u32 %v1150, 2147483648
    %v1155 = vxor.u32 %v1151, 2147483648
    %v1156 = vxor.u32 %v1152, 2147483648
    %v1157 = vmul.f32 %v1154, 1.442695
    %v1158 = vpow.pop %v1157
    %v1159 = vmul.f32 %v1155, 1.442695
    %v1160 = vpow.pop %v1159
    %v1161 = vmul.f32 %v1156, 1.442695
    %v1162 = vpow.pop %v1161
    %v1163 = vadd.f32 %v1158, 1.0
    %v1164 = vadd.f32 %v1160, 1.0
    %v1165 = vadd.f32 %v1162, 1.0
    %v1166 = vrcp.pop %v1163
    %v1167 = vmul.f32 %v1163, %v1166
    %v1168 = vsub.f32 1.0, %v1167
    %v1169 = vmul.f32 %v1166, %v1168
    %v1170 = vadd.f32 %v1166, %v1169
    %vm1171 = vweird.f32 %v1163
    %vm1172 = vweird.f32 %v1166
    %vm1173 = vmor %vm1171, %vm1172
    %v1174 = vsel %vm1173, %v1166, %v1170
    %v1175 = vand.u32 2147483647, %v1163
    %vm1176 = vcmp.eq.f32.partialorder %v1175, 8.507059e+37
    %v1177 = vand.u32 %v1163, 2147483648
    %v1178 = vor.u32 1.1754944e-38, %v1177
    %v1179 = vsel %vm1176, %v1178, %v1174
    %v1180 = vmul.f32 1.0, %v1179
    %v1181 = vrcp.pop %v1164
    %v1182 = vmul.f32 %v1164, %v1181
    %v1183 = vsub.f32 1.0, %v1182
    %v1184 = vmul.f32 %v1181, %v1183
    %v1185 = vadd.f32 %v1181, %v1184
    %vm1186 = vweird.f32 %v1164
    %vm1187 = vweird.f32 %v1181
    %vm1188 = vmor %vm1186, %vm1187
    %v1189 = vsel %vm1188, %v1181, %v1185
    %v1190 = vand.u32 2147483647, %v1164
    %vm1191 = vcmp.eq.f32.partialorder %v1190, 8.507059e+37
    %v1192 = vand.u32 %v1164, 2147483648
    %v1193 = vor.u32 1.1754944e-38, %v1192
    %v1194 = vsel %vm1191, %v1193, %v1189
    %v1195 = vmul.f32 1.0, %v1194
    %v1196 = vrcp.pop %v1165
    %v1197 = vmul.f32 %v1165, %v1196
    %v1198 = vsub.f32 1.0, %v1197
    %v1199 = vmul.f32 %v1196, %v1198
    %v1200 = vadd.f32 %v1196, %v1199
    %vm1201 = vweird.f32 %v1165
    %vm1202 = vweird.f32 %v1196
    %vm1203 = vmor %vm1201, %vm1202
    %v1204 = vsel %vm1203, %v1196, %v1200
    %v1205 = vand.u32 2147483647, %v1165
    %vm1206 = vcmp.eq.f32.partialorder %v1205, 8.507059e+37
    %v1207 = vand.u32 %v1165, 2147483648
    %v1208 = vor.u32 1.1754944e-38, %v1207
    %v1209 = vsel %vm1206, %v1208, %v1204
    %v1210 = vmul.f32 1.0, %v1209
    %v1211 = vtanh.pop %v1153
    %v1212 = vmul.f32 %v1180, %v1079
    %v1213 = vmul.f32 %v1195, %v1211
    %v1214 = vadd.f32 %v1212, %v1213
    %v1215 = vtanh.pop %v1214
    %v1216 = vmul.f32 %v1210, %v1215
    %s1217 = scalar_lea.vmem [#allocation12], 48
    %1218 = vst [vmem:[%s1217] sm:$0xff] %v1216
    %s1219 = sadd.s32 %s120, 6
    %p1220 = scmp.eq.s32.totalorder %s1219, 7
    // Predicated region
    $region62: #{tpu_custom_call.1} parent=1 // pred_check
      %p1221 = pneg %p1220
    $region63: #{tpu_custom_call.1} parent=1 // pred_check_branch
      %1223 = sbr.rel (%p1221) target = $region65
    $region64: #{tpu_custom_call.1} parent=1 // pred_region
      %1224 = vst [vmem:[#allocation13] sm:$0xff] %v1214
    $region65: #{tpu_custom_call.1} parent=1 // pred_fallthru
      _
    %s1225 = scalar_lea.vmem [#allocation4], 112
    %v1226 = vld [vmem:[%s1225] sm:$0xff]
    %v1227 = vld [vmem:[%s1225 + $0x8] sm:$0xff]
    %v1228 = vunpack.c.l.bf16 %v1226
    %v1229 = vunpack.c.h.bf16 %v1226
    %v1230 = vunpack.c.l.bf16 %v1227
    %v1231 = vunpack.c.h.bf16 %v1227
    %v1232 = vpack.c.bf16 %v1216, %v1216
    %1233 = vmatpush.bf16.msra.mxu0 %v254
    %1234 = vmatpush.bf16.msra.mxu0 %v250
    %1235 = vmatpush.bf16.msra.mxu0 %v246
    %1236 = vmatpush.bf16.msra.mxu0 %v242
    %1237 = vmatpush.bf16.msra.mxu0 %v238
    %1238 = vmatpush.bf16.msra.mxu0 %v234
    %1239 = vmatpush.bf16.msra.mxu0 %v230
    %1240 = vmatpush.bf16.msra.mxu0 %v226
    %1241 = vmatmul.bf16.gmra.mxu0 %v1232
    %v1242 = vpop.f32.mrf.mxu0
    %v1243 = vadd.f32 0.0, %v1242
    %v1244 = vpop.f32.mrf.mxu0
    %1245 = vdwg.mxu0
    %1246 = vmatpush.bf16.msra.mxu0 %v255
    %1247 = vmatpush.bf16.msra.mxu0 %v251
    %1248 = vmatpush.bf16.msra.mxu0 %v247
    %1249 = vmatpush.bf16.msra.mxu0 %v243
    %1250 = vmatpush.bf16.msra.mxu0 %v239
    %1251 = vmatpush.bf16.msra.mxu0 %v235
    %1252 = vmatpush.bf16.msra.mxu0 %v231
    %1253 = vmatpush.bf16.msra.mxu0 %v227
    %1254 = vmatmul.bf16.gmra.mxu0 %v1232
    %v1255 = vpop.f32.mrf.mxu0
    %v1256 = vadd.f32 0.0, %v1255
    %v1257 = vpop.f32.mrf.mxu0
    %1258 = vdwg.mxu0
    %1259 = vmatpush.bf16.msra.mxu0 %v256
    %1260 = vmatpush.bf16.msra.mxu0 %v252
    %1261 = vmatpush.bf16.msra.mxu0 %v248
    %1262 = vmatpush.bf16.msra.mxu0 %v244
    %1263 = vmatpush.bf16.msra.mxu0 %v240
    %1264 = vmatpush.bf16.msra.mxu0 %v236
    %1265 = vmatpush.bf16.msra.mxu0 %v232
    %1266 = vmatpush.bf16.msra.mxu0 %v228
    %1267 = vmatmul.bf16.gmra.mxu0 %v1232
    %v1268 = vpop.f32.mrf.mxu0
    %v1269 = vadd.f32 0.0, %v1268
    %v1270 = vpop.f32.mrf.mxu0
    %1271 = vdwg.mxu0
    %1272 = vmatpush.bf16.msra.mxu0 %v257
    %1273 = vmatpush.bf16.msra.mxu0 %v253
    %1274 = vmatpush.bf16.msra.mxu0 %v249
    %1275 = vmatpush.bf16.msra.mxu0 %v245
    %1276 = vmatpush.bf16.msra.mxu0 %v241
    %1277 = vmatpush.bf16.msra.mxu0 %v237
    %1278 = vmatpush.bf16.msra.mxu0 %v233
    %1279 = vmatpush.bf16.msra.mxu0 %v229
    %1280 = vmatmul.bf16.gmra.mxu0 %v1232
    %v1281 = vpop.f32.mrf.mxu0
    %v1282 = vadd.f32 0.0, %v1281
    %v1283 = vpop.f32.mrf.mxu0
    %1284 = vdwg.mxu0
    %v1285 = vadd.f32 %v1228, %v1243
    %v1286 = vadd.f32 %v1229, %v1256
    %v1287 = vadd.f32 %v1230, %v1269
    %v1288 = vadd.f32 %v1231, %v1282
    %v1289 = vxor.u32 %v1285, 2147483648
    %v1290 = vxor.u32 %v1286, 2147483648
    %v1291 = vxor.u32 %v1287, 2147483648
    %v1292 = vmul.f32 %v1289, 1.442695
    %v1293 = vpow.pop %v1292
    %v1294 = vmul.f32 %v1290, 1.442695
    %v1295 = vpow.pop %v1294
    %v1296 = vmul.f32 %v1291, 1.442695
    %v1297 = vpow.pop %v1296
    %v1298 = vadd.f32 %v1293, 1.0
    %v1299 = vadd.f32 %v1295, 1.0
    %v1300 = vadd.f32 %v1297, 1.0
    %v1301 = vrcp.pop %v1298
    %v1302 = vmul.f32 %v1298, %v1301
    %v1303 = vsub.f32 1.0, %v1302
    %v1304 = vmul.f32 %v1301, %v1303
    %v1305 = vadd.f32 %v1301, %v1304
    %vm1306 = vweird.f32 %v1298
    %vm1307 = vweird.f32 %v1301
    %vm1308 = vmor %vm1306, %vm1307
    %v1309 = vsel %vm1308, %v1301, %v1305
    %v1310 = vand.u32 2147483647, %v1298
    %vm1311 = vcmp.eq.f32.partialorder %v1310, 8.507059e+37
    %v1312 = vand.u32 %v1298, 2147483648
    %v1313 = vor.u32 1.1754944e-38, %v1312
    %v1314 = vsel %vm1311, %v1313, %v1309
    %v1315 = vmul.f32 1.0, %v1314
    %v1316 = vrcp.pop %v1299
    %v1317 = vmul.f32 %v1299, %v1316
    %v1318 = vsub.f32 1.0, %v1317
    %v1319 = vmul.f32 %v1316, %v1318
    %v1320 = vadd.f32 %v1316, %v1319
    %vm1321 = vweird.f32 %v1299
    %vm1322 = vweird.f32 %v1316
    %vm1323 = vmor %vm1321, %vm1322
    %v1324 = vsel %vm1323, %v1316, %v1320
    %v1325 = vand.u32 2147483647, %v1299
    %vm1326 = vcmp.eq.f32.partialorder %v1325, 8.507059e+37
    %v1327 = vand.u32 %v1299, 2147483648
    %v1328 = vor.u32 1.1754944e-38, %v1327
    %v1329 = vsel %vm1326, %v1328, %v1324
    %v1330 = vmul.f32 1.0, %v1329
    %v1331 = vrcp.pop %v1300
    %v1332 = vmul.f32 %v1300, %v1331
    %v1333 = vsub.f32 1.0, %v1332
    %v1334 = vmul.f32 %v1331, %v1333
    %v1335 = vadd.f32 %v1331, %v1334
    %vm1336 = vweird.f32 %v1300
    %vm1337 = vweird.f32 %v1331
    %vm1338 = vmor %vm1336, %vm1337
    %v1339 = vsel %vm1338, %v1331, %v1335
    %v1340 = vand.u32 2147483647, %v1300
    %vm1341 = vcmp.eq.f32.partialorder %v1340, 8.507059e+37
    %v1342 = vand.u32 %v1300, 2147483648
    %v1343 = vor.u32 1.1754944e-38, %v1342
    %v1344 = vsel %vm1341, %v1343, %v1339
    %v1345 = vmul.f32 1.0, %v1344
    %v1346 = vtanh.pop %v1288
    %v1347 = vmul.f32 %v1315, %v1214
    %v1348 = vmul.f32 %v1330, %v1346
    %v1349 = vadd.f32 %v1347, %v1348
    %v1350 = vtanh.pop %v1349
    %v1351 = vmul.f32 %v1345, %v1350
    %s1352 = scalar_lea.vmem [#allocation12], 56
    %1353 = vst [vmem:[%s1352] sm:$0xff] %v1351
    %s1354 = sadd.s32 %s120, 7
    %p1355 = scmp.eq.s32.totalorder %s1354, 7
    // Predicated region
    $region66: #{tpu_custom_call.1} parent=1 // pred_check
      %p1356 = pneg %p1355
    $region67: #{tpu_custom_call.1} parent=1 // pred_check_branch
      %1358 = sbr.rel (%p1356) target = $region69
    $region68: #{tpu_custom_call.1} parent=1 // pred_region
      %1359 = vst [vmem:[#allocation13] sm:$0xff] %v1349
    $region69: #{tpu_custom_call.1} parent=1 // pred_fallthru
      _
    %1360 = vst [vmem:[#allocation2] sm:$0xff] %v1351
    %1361 = vst [vmem:[#allocation3] sm:$0xff] %v1349
    // Predicated region
    $region70: #{tpu_custom_call.1} parent=1 // pred_check
      _
    $region71: #{tpu_custom_call.1} parent=1 // pred_check_branch
      %1363 = sbr.rel (0) target = $region73
    $region72: #{tpu_custom_call.1} parent=1 // pred_region
      %1365 = vsyncadd [#allocation6], 0
      %s1366 = sshll.u32 [#allocation12], 4
      %s1367 = int_to_ptr.vmem [resolvable:$true] %s1366
      %s1368 = sshll.u32 %s4, 4
      %s1369 = int_to_ptr.hbm [resolvable:$true] %s1368
      %1374 = dma.vmem_to_hbm [thread:$0]  %s1367, 1024, %s1369, [#allocation6], 128, 128, 8
    $region73: #{tpu_custom_call.1} parent=1 // pred_fallthru
      _
    // Predicated region
    $region74: #{tpu_custom_call.1} parent=1 // pred_check
      _
    $region75: #{tpu_custom_call.1} parent=1 // pred_check_branch
      %1376 = sbr.rel (0) target = $region77
    $region76: #{tpu_custom_call.1} parent=1 // pred_region
      %1378 = vsyncadd [#allocation14], 0
      %s1380 = sshll.u32 [#allocation13], 4
      %s1381 = int_to_ptr.vmem [resolvable:$true] %s1380
      %s1382 = sshll.u32 %s5, 4
      %s1383 = int_to_ptr.hbm [resolvable:$true] %s1382
      %1385 = dma.vmem_to_hbm [thread:$0]  %s1381, 128, %s1383, [#allocation14]
    $region77: #{tpu_custom_call.1} parent=1 // pred_fallthru
      _
    // Predicated region
    $region78: #{tpu_custom_call.1} parent=1 // pred_check
      _
    $region79: #{tpu_custom_call.1} parent=1 // pred_check_branch
      %1387 = sbr.rel (0) target = $region81
    $region80: #{tpu_custom_call.1} parent=1 // pred_region
      %1389 = dma.done [#allocation6], 1024
    $region81: #{tpu_custom_call.1} parent=1 // pred_fallthru
      _
    // Predicated region
    $region82: #{tpu_custom_call.1} parent=1 // pred_check
      _
    $region83: #{tpu_custom_call.1} parent=1 // pred_check_branch
      %1391 = sbr.rel (0) target = $region85
    $region84: #{tpu_custom_call.1} parent=1 // pred_region
      %1393 = dma.done [#allocation14], 128
    $region85: #{tpu_custom_call.1} parent=1 // pred_fallthru
      _
    %1394 = vsyncpa [#allocation5], 1
    %1395 = vsyncpa [#allocation8], 1
    %1396 = vsyncpa [#allocation11], 1
    %1397 = vsyncpa [#allocation6], 1
    %1398 = vsyncpa [#allocation14], 1

</llo_original>
